<compile_context>
chip_gen: v6e
topology: v6e:2x2x1
jax: 0.10.0
libtpu: 0.0.40
codegen_flags: <defaults>
</compile_context>

<pallas_src>
import functools

import jax
import jax.numpy as jnp
from jax import lax
from jax.experimental import pallas as pl
from jax.experimental.pallas import tpu as pltpu


def _round_up(x: int, m: int) -> int:
    return ((x + m - 1) // m) * m


# ----------------------------------------------------------------------------
# Pallas kernel: nearest-codeword lookup + quantized values + fused loss row
# ----------------------------------------------------------------------------
def _vq_kernel(z_ref, e_ref, et_ref, e2_ref, zq_ref, idx_ref, err_ref):
    """One lane-tile of pixels.

    Shapes (f32 unless noted):
      z_ref  : (Dp, tile_n)       pixels on lanes, features on sublanes
      e_ref  : (n_e_pad, Dp)      codebook (resident across tiles)
      et_ref : (Dp, n_e_pad)      codebook, pre-transposed (resident)
      e2_ref : (n_e_pad, 1)       ||e_j||^2, +BIG on padded codewords (resident)
      zq_ref : (Dp, tile_n)       quantized values (lane-dense)
      idx_ref: (1, tile_n) int32  argmin codeword index per pixel (lane-dense)
      err_ref: (1, tile_n)        per-pixel sum over features of (z_q - z)^2
    """
    z = z_ref[...]
    e = e_ref[...]
    e2 = e2_ref[...]
    n_e_pad = e.shape[0]

    # argmin_j ||z_i - e_j||^2 == argmin_j (||e_j||^2 - 2 e_j . z_i); the per-pixel
    # ||z_i||^2 term is constant per column and dropped.  Cross term on the MXU.
    cross = lax.dot_general(e, z, (((1,), (0,)), ((), ())),
                            preferred_element_type=jnp.float32)   # (n_e_pad, tile_n)
    d = e2 - 2.0 * cross

    # first-occurrence argmin over the codeword (sublane) axis, matching
    # torch.argmin tie-breaking; padded codewords carry +BIG so they never win.
    dmin = jnp.min(d, axis=0, keepdims=True)                       # (1, tile_n)
    row = lax.broadcasted_iota(jnp.int32, d.shape, 0)
    idx = jnp.min(jnp.where(d == dmin, row, n_e_pad),
                  axis=0, keepdims=True)                           # (1, tile_n) i32

    # codebook lookup as a one-hot matmul; output stays lane-dense (Dp, tile_n).
    onehot = (row == idx).astype(jnp.float32)                      # (n_e_pad, tile_n)
    zq = lax.dot_general(et_ref[...], onehot, (((1,), (0,)), ((), ())),
                         preferred_element_type=jnp.float32)       # (Dp, tile_n)

    zq_ref[...] = zq
    idx_ref[...] = idx
    diff = zq - z                      # padded feature rows are 0 on both sides
    err_ref[...] = jnp.sum(diff * diff, axis=0, keepdims=True)


# ----------------------------------------------------------------------------
# Wrapper: VectorQuantizer.forward (remap=None, sane_index_shape=False)
# ----------------------------------------------------------------------------
def vector_quantizer_forward(z_nchw, embedding, *, beta=0.25, legacy=False,
                             tile_n=1024):
    """Returns (z_q [NCHW, input dtype], loss, (perplexity=None, min_encodings=None, indices))."""
    B, C, H, W = z_nchw.shape
    n_e, e_dim = embedding.shape
    assert C == e_dim, (C, e_dim)
    N = B * H * W

    # ---- layout: features -> sublanes (pad to 8), pixels -> lanes (pad to tile)
    d_pad = _round_up(e_dim, 8)
    n_e_pad = _round_up(n_e, 8)

    tile_n = _round_up(max(tile_n, 128), 128)
    if N > 128:                                   # >= 2 tiles so both v7x TCs work
        tile_n = min(tile_n, _round_up(-(-N // 2), 128))
    # bound each (n_e_pad x tile_n) f32 distance / one-hot temporary to ~6 MiB so
    # everything fits the 32 MiB scoped VMEM (v7x has 64 MiB physical).
    max_tile = max(128, ((6 * 1024 * 1024) // (4 * n_e_pad)) // 128 * 128)
    tile_n = min(tile_n, max_tile)
    n_pad = _round_up(N, tile_n)
    n_tiles = n_pad // tile_n

    z_f32 = z_nchw.astype(jnp.float32)
    # (C, B*H*W) with pixel order (b, h, w) -- same flattening order as torch's
    # permute(0,2,3,1).view(-1, C).
    z_t = jnp.transpose(z_f32, (1, 0, 2, 3)).reshape(e_dim, N)
    z_p = jnp.zeros((d_pad, n_pad), jnp.float32).at[:e_dim, :N].set(z_t)

    e_p = jnp.zeros((n_e_pad, d_pad), jnp.float32).at[:n_e, :e_dim].set(
        embedding.astype(jnp.float32))
    e_t = e_p.T                                                   # (Dp, n_e_pad)
    # hoisted ||e_j||^2 column (computed once) + pad penalty so padded codewords
    # (whose distance would otherwise be 0) can never win the argmin.
    e2 = jnp.sum(e_p * e_p, axis=1)
    e2 = jnp.where(jnp.arange(n_e_pad) < n_e, e2, 1e30).reshape(n_e_pad, 1)

    zq_p, idx_p, err_p = pl.pallas_call(
        _vq_kernel,
        out_shape=(
            jax.ShapeDtypeStruct((d_pad, n_pad), jnp.float32),
            jax.ShapeDtypeStruct((1, n_pad), jnp.int32),
            jax.ShapeDtypeStruct((1, n_pad), jnp.float32),
        ),
        grid=(n_tiles,),
        in_specs=[
            pl.BlockSpec((d_pad, tile_n), lambda i: (0, i)),      # z tile (pipelined)
            pl.BlockSpec((n_e_pad, d_pad), lambda i: (0, 0)),     # codebook (resident)
            pl.BlockSpec((d_pad, n_e_pad), lambda i: (0, 0)),     # codebook^T (resident)
            pl.BlockSpec((n_e_pad, 1), lambda i: (0, 0)),         # ||e||^2 + pad bias
        ],
        out_specs=(
            pl.BlockSpec((d_pad, tile_n), lambda i: (0, i)),      # z_q (lane-dense)
            pl.BlockSpec((1, tile_n), lambda i: (0, i)),          # indices (lane-dense)
            pl.BlockSpec((1, tile_n), lambda i: (0, i)),          # per-pixel sq-err
        ),
        compiler_params=pltpu.CompilerParams(
            dimension_semantics=("parallel",),        # v7x: both TensorCores
            vmem_limit_bytes=32 * 1024 * 1024,
        ),
    )(z_p, e_p, e_t, e2)

    z_q_val = zq_p[:e_dim, :N].reshape(e_dim, B, H, W).transpose(1, 0, 2, 3)  # NCHW
    indices = idx_p[0, :N]

    # loss forward value: legacy=False -> beta*mean((zq.detach()-z)^2) + mean((zq-z.detach())^2)
    # legacy=True  -> mean(...) + beta*mean(...).  Both equal (1+beta)*mean((zq-z)^2)
    # in the forward pass (detach only changes gradients).
    # TODO(synk): stop_gradient/detach placement inside the loss (and legacy's beta
    # assignment) is not reproduced for autodiff; this matches forward values only.
    mse = jnp.sum(err_p[0, :N]) / float(N * e_dim)
    loss = (1.0 + beta) * mse

    # straight-through estimator: forward value is z_q, gradient path is z.
    z_q = z_f32 + lax.stop_gradient(z_q_val - z_f32)
    z_q = z_q.astype(z_nchw.dtype)

    # TODO(synk): remap / sane_index_shape post-processing of indices is not
    # implemented (module defaults remap=None, sane_index_shape=False are covered).
    return z_q, loss, (None, None, indices)


# ----------------------------------------------------------------------------
if __name__ == "__main__":
    key = jax.random.PRNGKey(0)
    k_emb, k_x = jax.random.split(key)

    n_e, e_dim, beta = 256, 4, 0.25
    # nn.Embedding(n_e, e_dim).weight.data.uniform_(-1/n_e, 1/n_e)
    embedding = jax.random.uniform(k_emb, (n_e, e_dim), jnp.float32,
                                   minval=-1.0 / n_e, maxval=1.0 / n_e)
    x = jax.random.normal(k_x, (2, e_dim, 16, 16), jnp.float32)    # NCHW latent

    fwd = jax.jit(functools.partial(vector_quantizer_forward, beta=beta))
    z_q, loss, (_, _, idx) = fwd(x, embedding)
    jax.block_until_ready((z_q, loss, idx))

    # pure-JAX reference (same math as the PyTorch module, forward only)
    def reference(z_nchw, emb):
        z = jnp.transpose(z_nchw, (0, 2, 3, 1)).astype(jnp.float32)
        zf = z.reshape(-1, emb.shape[1])
        d = (jnp.sum(zf ** 2, axis=1, keepdims=True) + jnp.sum(emb ** 2, axis=1)
             - 2.0 * zf @ emb.T)
        ind = jnp.argmin(d, axis=1)
        zq = emb[ind].reshape(z.shape)
        l = beta * jnp.mean((zq - z) ** 2) + jnp.mean((zq - z) ** 2)
        return jnp.transpose(zq, (0, 3, 1, 2)), l, ind

    ref_zq, ref_loss, ref_idx = reference(x, embedding)

    assert z_q.shape == x.shape, z_q.shape
    assert loss.shape == (), loss.shape
    assert idx.shape == (x.shape[0] * x.shape[2] * x.shape[3],), idx.shape
    assert bool(jnp.all(jnp.isfinite(z_q))) and bool(jnp.isfinite(loss))
    # loose tolerances: near-tied codewords may resolve differently under MXU vs
    # XLA matmul rounding; any such swap stays within the codebook radius (~1/n_e).
    assert bool(jnp.allclose(z_q, ref_zq, atol=2e-2)), "z_q mismatch vs reference"
    assert bool(jnp.allclose(loss, ref_loss, rtol=5e-3, atol=1e-4)), "loss mismatch"
    print("KERNEL_OK")
</pallas_src>

<mosaic_0001>
module attributes {stable_mosaic.version = 11 : i64} {
  func.func @_vq_kernel(%arg0: i32, %arg1: memref<8x256xf32, #tpu.memory_space<vmem>>, %arg2: memref<256x8xf32, #tpu.memory_space<vmem>>, %arg3: memref<8x256xf32, #tpu.memory_space<vmem>>, %arg4: memref<256x1xf32, #tpu.memory_space<vmem>>, %arg5: memref<8x256xf32, #tpu.memory_space<vmem>>, %arg6: memref<1x256xi32, #tpu.memory_space<vmem>>, %arg7: memref<1x256xf32, #tpu.memory_space<vmem>>) attributes {dimension_semantics = [#tpu.dimension_semantics<parallel>], iteration_bounds = array<i64: 2>, scalar_prefetch = 0 : i64, scratch_operands = 0 : i64, tpu.core_type = #tpu.core_type<tc>, window_params = [{transform_indices = @transform_0, window_bounds = array<i64: 8, 256>}, {pipeline_mode = #tpu.pipeline_mode<synchronous>, transform_indices = @transform_1, window_bounds = array<i64: 256, 8>}, {pipeline_mode = #tpu.pipeline_mode<synchronous>, transform_indices = @transform_2, window_bounds = array<i64: 8, 256>}, {pipeline_mode = #tpu.pipeline_mode<synchronous>, transform_indices = @transform_3, window_bounds = array<i64: 256, 1>}, {transform_indices = @transform_4, window_bounds = array<i64: 8, 256>}, {transform_indices = @transform_5, window_bounds = array<i64: 1, 256>}, {transform_indices = @transform_6, window_bounds = array<i64: 1, 256>}]} {
    %c0 = arith.constant 0 : index
    %c0_0 = arith.constant 0 : index
    %0 = vector.load %arg1[%c0, %c0_0] : memref<8x256xf32, #tpu.memory_space<vmem>>, vector<8x256xf32>
    %c0_1 = arith.constant 0 : index
    %c0_2 = arith.constant 0 : index
    %1 = vector.load %arg2[%c0_1, %c0_2] : memref<256x8xf32, #tpu.memory_space<vmem>>, vector<256x8xf32>
    %c0_3 = arith.constant 0 : index
    %c0_4 = arith.constant 0 : index
    %2 = vector.load %arg4[%c0_3, %c0_4] : memref<256x1xf32, #tpu.memory_space<vmem>>, vector<256x1xf32>
    %cst = arith.constant dense<0.000000e+00> : vector<256x256xf32>
    %3 = tpu.matmul %1, %0, %cst {dimension_numbers = #tpu.dot_dimension_numbers<[1], [0], [0], [1], [0, 0, 1, 1], [], []>} : vector<256x8xf32>, vector<8x256xf32>, vector<256x256xf32> -> vector<256x256xf32>
    %cst_5 = arith.constant 2.000000e+00 : f32
    %4 = vector.broadcast %cst_5 : f32 to vector<256x256xf32>
    %5 = arith.mulf %4, %3 : vector<256x256xf32>
    %6 = vector.broadcast %2 : vector<256x1xf32> to vector<256x256xf32>
    %7 = arith.subf %6, %5 : vector<256x256xf32>
    %cst_6 = arith.constant dense<0x7F800000> : vector<256xf32>
    %8 = vector.multi_reduction <minimumf>, %7, %cst_6 [0] : vector<256x256xf32> to vector<256xf32>
    %9 = vector.shape_cast %8 : vector<256xf32> to vector<1x256xf32>
    %10 = tpu.iota {dimensions = array<i32: 0>} : vector<256x256xi32>
    %11 = vector.broadcast %9 : vector<1x256xf32> to vector<256x256xf32>
    %12 = arith.cmpf oeq, %7, %11 : vector<256x256xf32>
    %c256_i32 = arith.constant 256 : i32
    %13 = vector.broadcast %c256_i32 : i32 to vector<256x256xi32>
    %14 = arith.select %12, %10, %13 : vector<256x256xi1>, vector<256x256xi32>
    %cst_7 = arith.constant dense<2147483647> : vector<256xi32>
    %15 = vector.multi_reduction <minsi>, %14, %cst_7 [0] : vector<256x256xi32> to vector<256xi32>
    %16 = vector.shape_cast %15 : vector<256xi32> to vector<1x256xi32>
    %17 = vector.broadcast %16 : vector<1x256xi32> to vector<256x256xi32>
    %18 = arith.cmpi eq, %10, %17 : vector<256x256xi32>
    %19 = arith.extui %18 : vector<256x256xi1> to vector<256x256xi32>
    %20 = arith.sitofp %19 : vector<256x256xi32> to vector<256x256xf32>
    %c0_8 = arith.constant 0 : index
    %c0_9 = arith.constant 0 : index
    %21 = vector.load %arg3[%c0_8, %c0_9] : memref<8x256xf32, #tpu.memory_space<vmem>>, vector<8x256xf32>
    %cst_10 = arith.constant dense<0.000000e+00> : vector<8x256xf32>
    %22 = tpu.matmul %21, %20, %cst_10 {dimension_numbers = #tpu.dot_dimension_numbers<[1], [0], [0], [1], [0, 0, 1, 1], [], []>} : vector<8x256xf32>, vector<256x256xf32>, vector<8x256xf32> -> vector<8x256xf32>
    %c0_11 = arith.constant 0 : index
    %c0_12 = arith.constant 0 : index
    %23 = vector.load %arg5[%c0_11, %c0_12] : memref<8x256xf32, #tpu.memory_space<vmem>>, vector<8x256xf32>
    tpu.vector_store %arg5[%c0_11, %c0_12], %22 {strides = array<i32>} : memref<8x256xf32, #tpu.memory_space<vmem>>, vector<8x256xf32>,
    %c0_13 = arith.constant 0 : index
    %c0_14 = arith.constant 0 : index
    %24 = vector.load %arg6[%c0_13, %c0_14] : memref<1x256xi32, #tpu.memory_space<vmem>>, vector<1x256xi32>
    tpu.vector_store %arg6[%c0_13, %c0_14], %16 {strides = array<i32>} : memref<1x256xi32, #tpu.memory_space<vmem>>, vector<1x256xi32>,
    %25 = arith.subf %22, %0 : vector<8x256xf32>
    %26 = arith.mulf %25, %25 : vector<8x256xf32>
    %cst_15 = arith.constant dense<0.000000e+00> : vector<256xf32>
    %27 = vector.multi_reduction <add>, %26, %cst_15 [0] : vector<8x256xf32> to vector<256xf32>
    %28 = vector.shape_cast %27 : vector<256xf32> to vector<1x256xf32>
    %c0_16 = arith.constant 0 : index
    %c0_17 = arith.constant 0 : index
    %29 = vector.load %arg7[%c0_16, %c0_17] : memref<1x256xf32, #tpu.memory_space<vmem>>, vector<1x256xf32>
    tpu.vector_store %arg7[%c0_16, %c0_17], %28 {strides = array<i32>} : memref<1x256xf32, #tpu.memory_space<vmem>>, vector<1x256xf32>,
    return
  }
  func.func @transform_0(%arg0: i32) -> (i32, i32) {
    %c0_i32 = arith.constant 0 : i32
    %c0_i32_0 = arith.constant 0 : i32
    return %c0_i32, %arg0 : i32, i32
  }
  func.func @transform_1(%arg0: i32) -> (i32, i32) {
    %c0_i32 = arith.constant 0 : i32
    %c0_i32_0 = arith.constant 0 : i32
    %c0_i32_1 = arith.constant 0 : i32
    return %c0_i32, %c0_i32_0 : i32, i32
  }
  func.func @transform_2(%arg0: i32) -> (i32, i32) {
    %c0_i32 = arith.constant 0 : i32
    %c0_i32_0 = arith.constant 0 : i32
    %c0_i32_1 = arith.constant 0 : i32
    return %c0_i32, %c0_i32_0 : i32, i32
  }
  func.func @transform_3(%arg0: i32) -> (i32, i32) {
    %c0_i32 = arith.constant 0 : i32
    %c0_i32_0 = arith.constant 0 : i32
    %c0_i32_1 = arith.constant 0 : i32
    return %c0_i32, %c0_i32_0 : i32, i32
  }
  func.func @transform_4(%arg0: i32) -> (i32, i32) {
    %c0_i32 = arith.constant 0 : i32
    %c0_i32_0 = arith.constant 0 : i32
    return %c0_i32, %arg0 : i32, i32
  }
  func.func @transform_5(%arg0: i32) -> (i32, i32) {
    %c0_i32 = arith.constant 0 : i32
    %c0_i32_0 = arith.constant 0 : i32
    return %c0_i32, %arg0 : i32, i32
  }
  func.func @transform_6(%arg0: i32) -> (i32, i32) {
    %c0_i32 = arith.constant 0 : i32
    %c0_i32_0 = arith.constant 0 : i32
    return %c0_i32, %arg0 : i32, i32
  }
}

</mosaic_0001>

<llo_original>
// kernel: vector_quantizer_forward.1
$region0: #{vector_quantizer_forward.1}
  #allocation0 [shape = 'u32[]', space=smem, size = 0x4, offset = 0x4, fixed_abs, tag = 'smem constant byte address 0x4 - core index']
  #allocation1 [shape = 'u32[144,128]{1,0:T(1,128)}', space=vmem, size = 0x12000, scoped, tag = 'internal scratch']
  %s0 = inlined_call_operand.vmem [shape: f32[8,512], index: 0, kind: input, shape index: {}]
  %s1 = inlined_call_operand.vmem [shape: f32[256,8], index: 1, kind: input, shape index: {}]
  %s2 = inlined_call_operand.vmem [shape: f32[8,256], index: 2, kind: input, shape index: {}]
  %s3 = inlined_call_operand.vmem [shape: f32[256,1], index: 3, kind: input, shape index: {}]
  %s4 = inlined_call_operand.vmem [shape: f32[8,512], index: 4, kind: output, shape index: {0}]
  %s5 = inlined_call_operand.hbm [shape: s32[1,512], index: 5, kind: output, shape index: {1}]
  %s6 = inlined_call_operand.vmem [shape: f32[1,512], index: 6, kind: output, shape index: {2}]
  %7 = xla_tuple %s4, %s5, %s6
  %s8 = sld [smem:[#allocation0]]
  $region65: #{vector_quantizer_forward.1} parent=0
    _
  %s10 = ssub.s32 1, %s8
  %s11 = scalar_select 0, %s10, %s8
  $region1: #{vector_quantizer_forward.1} parent=0
    #allocation2 [shape = 'u8[2048]{0}', space=vmem, size = 0x800, scoped, tag = 'output window, operand 1']
    #allocation3 [shape = 's32[2]{0}', space=sflag, size = 0x8, scoped, tag = 'scoped memory for vector_quantizer_forward.1']
    %12 = vsyncpa [#allocation3], 0
    %s13 = scalar_lea.sflag [#allocation3], 1
    %14 = vsyncpa %s13, 0
    loop: start=0, step=1, limit=4
    $region2: #{vector_quantizer_forward.1} parent=1 // loop_pre_header
      _
    $region3: #{vector_quantizer_forward.1} parent=1 // loop_header
      %s16 = sphi 0, %s20
      %p17 = scmp.ge.s32.totalorder %s16, 4
      %s26 = sphi 0, %s28
      %s29 = sphi 0, %s26
      %s30 = sphi 0, %s29
      %s46 = sphi 0, %s30
      %s50 = sphi 0, %s50
      %s52 = sphi 0, %s50
      %s53 = sphi 0, %s52
      %s67 = sphi 0, %s53
      %s71 = sphi 0, %s71
      %s73 = sphi 0, %s71
      %s74 = sphi 0, %s73
      %s88 = sphi 0, %s74
      %s92 = sphi 0, %s92
      %s94 = sphi 0, %s92
      %s95 = sphi 0, %s94
      %s109 = sphi 0, %s95
      %s115 = sphi 0, %s117
      %s118 = sphi 0, %s115
      %s119 = sphi 0, %s118
      %s135 = sphi 0, %s119
      %s141 = sphi 0, %s143
      %s144 = sphi 0, %s141
      %s145 = sphi 0, %s144
      %s161 = sphi 0, %s145
      %s167 = sphi 0, %s169
      %s170 = sphi 0, %s167
      %s171 = sphi 0, %s170
      %s187 = sphi 0, %s171
    $region4: #{vector_quantizer_forward.1} parent=1 // loop_header_branch
      %19 = sbr.rel (%p17) target = $region8
    $region5: #{vector_quantizer_forward.1} parent=1 // loop_body
      %s21 = ssub.s32 %s16, 1
      %s22 = ssub.s32 %s16, 2
      %s23 = sadd.s32 %s16, 1
      %s24 = ssub.s32 %s16, %s23
      %p25 = scmp.eq.s32.totalorder %s24, 0
      %s27 = sadd.s32 %s26, 1
      %s28 = scalar_select %p25, %s26, %s27
      %p31 = pneg %p25
      %p32 = scmp.eq.s32.totalorder %s16, 1
      %p33 = por %p31, %p32
      %p34 = scmp.ne.s32.totalorder %s26, %s29
      %p35 = scmp.eq.s32.totalorder %s16, 0
      %p36 = por %p34, %p35
      %p37 = scmp.ne.s32.totalorder %s26, %s29
      %p38 = scmp.eq.s32.totalorder %s21, 1
      %p39 = por %p37, %p38
      %p40 = scmp.ne.s32.totalorder %s29, %s30
      %p41 = scmp.eq.s32.totalorder %s21, 0
      %p42 = por %p40, %p41
      %p43 = scmp.ne.s32.totalorder %s29, %s30
      %p44 = scmp.eq.s32.totalorder %s22, 1
      %p45 = por %p43, %p44
      %p47 = scmp.ne.s32.totalorder %s30, %s46
      %p48 = scmp.eq.s32.totalorder %s22, 0
      %p49 = por %p47, %p48
      %s51 = sadd.s32 %s50, 1
      %p54 = scmp.eq.s32.totalorder %s16, 1
      %p55 = scmp.ne.s32.totalorder %s50, %s52
      %p56 = scmp.eq.s32.totalorder %s16, 0
      %p57 = por %p55, %p56
      %p58 = scmp.ne.s32.totalorder %s50, %s52
      %p59 = scmp.eq.s32.totalorder %s21, 1
      %p60 = por %p58, %p59
      %p61 = scmp.ne.s32.totalorder %s52, %s53
      %p62 = scmp.eq.s32.totalorder %s21, 0
      %p63 = por %p61, %p62
      %p64 = scmp.ne.s32.totalorder %s52, %s53
      %p65 = scmp.eq.s32.totalorder %s22, 1
      %p66 = por %p64, %p65
      %p68 = scmp.ne.s32.totalorder %s53, %s67
      %p69 = scmp.eq.s32.totalorder %s22, 0
      %p70 = por %p68, %p69
      %s72 = sadd.s32 %s71, 1
      %p75 = scmp.eq.s32.totalorder %s16, 1
      %p76 = scmp.ne.s32.totalorder %s71, %s73
      %p77 = scmp.eq.s32.totalorder %s16, 0
      %p78 = por %p76, %p77
      %p79 = scmp.ne.s32.totalorder %s71, %s73
      %p80 = scmp.eq.s32.totalorder %s21, 1
      %p81 = por %p79, %p80
      %p82 = scmp.ne.s32.totalorder %s73, %s74
      %p83 = scmp.eq.s32.totalorder %s21, 0
      %p84 = por %p82, %p83
      %p85 = scmp.ne.s32.totalorder %s73, %s74
      %p86 = scmp.eq.s32.totalorder %s22, 1
      %p87 = por %p85, %p86
      %p89 = scmp.ne.s32.totalorder %s74, %s88
      %p90 = scmp.eq.s32.totalorder %s22, 0
      %p91 = por %p89, %p90
      %s93 = sadd.s32 %s92, 1
      %p96 = scmp.eq.s32.totalorder %s16, 1
      %p97 = scmp.ne.s32.totalorder %s92, %s94
      %p98 = scmp.eq.s32.totalorder %s16, 0
      %p99 = por %p97, %p98
      %p100 = scmp.ne.s32.totalorder %s92, %s94
      %p101 = scmp.eq.s32.totalorder %s21, 1
      %p102 = por %p100, %p101
      %p103 = scmp.ne.s32.totalorder %s94, %s95
      %p104 = scmp.eq.s32.totalorder %s21, 0
      %p105 = por %p103, %p104
      %p106 = scmp.ne.s32.totalorder %s94, %s95
      %p107 = scmp.eq.s32.totalorder %s22, 1
      %p108 = por %p106, %p107
      %p110 = scmp.ne.s32.totalorder %s95, %s109
      %p111 = scmp.eq.s32.totalorder %s22, 0
      %p112 = por %p110, %p111
      %s113 = ssub.s32 %s16, %s23
      %p114 = scmp.eq.s32.totalorder %s113, 0
      %s116 = sadd.s32 %s115, 1
      %s117 = scalar_select %p114, %s115, %s116
      %p120 = pneg %p114
      %p121 = scmp.eq.s32.totalorder %s16, 1
      %p122 = por %p120, %p121
      %p123 = scmp.ne.s32.totalorder %s115, %s118
      %p124 = scmp.eq.s32.totalorder %s16, 0
      %p125 = por %p123, %p124
      %p126 = scmp.ne.s32.totalorder %s115, %s118
      %p127 = scmp.eq.s32.totalorder %s21, 1
      %p128 = por %p126, %p127
      %p129 = scmp.ne.s32.totalorder %s118, %s119
      %p130 = scmp.eq.s32.totalorder %s21, 0
      %p131 = por %p129, %p130
      %p132 = scmp.ne.s32.totalorder %s118, %s119
      %p133 = scmp.eq.s32.totalorder %s22, 1
      %p134 = por %p132, %p133
      %p136 = scmp.ne.s32.totalorder %s119, %s135
      %p137 = scmp.eq.s32.totalorder %s22, 0
      %p138 = por %p136, %p137
      %s139 = ssub.s32 %s16, %s23
      %p140 = scmp.eq.s32.totalorder %s139, 0
      %s142 = sadd.s32 %s141, 1
      %s143 = scalar_select %p140, %s141, %s142
      %p146 = pneg %p140
      %p147 = scmp.eq.s32.totalorder %s16, 1
      %p148 = por %p146, %p147
      %p149 = scmp.ne.s32.totalorder %s141, %s144
      %p150 = scmp.eq.s32.totalorder %s16, 0
      %p151 = por %p149, %p150
      %p152 = scmp.ne.s32.totalorder %s141, %s144
      %p153 = scmp.eq.s32.totalorder %s21, 1
      %p154 = por %p152, %p153
      %p155 = scmp.ne.s32.totalorder %s144, %s145
      %p156 = scmp.eq.s32.totalorder %s21, 0
      %p157 = por %p155, %p156
      %p158 = scmp.ne.s32.totalorder %s144, %s145
      %p159 = scmp.eq.s32.totalorder %s22, 1
      %p160 = por %p158, %p159
      %p162 = scmp.ne.s32.totalorder %s145, %s161
      %p163 = scmp.eq.s32.totalorder %s22, 0
      %p164 = por %p162, %p163
      %s165 = ssub.s32 %s16, %s23
      %p166 = scmp.eq.s32.totalorder %s165, 0
      %s168 = sadd.s32 %s167, 1
      %s169 = scalar_select %p166, %s167, %s168
      %p172 = pneg %p166
      %p173 = scmp.eq.s32.totalorder %s16, 1
      %p174 = por %p172, %p173
      %p175 = scmp.ne.s32.totalorder %s167, %s170
      %p176 = scmp.eq.s32.totalorder %s16, 0
      %p177 = por %p175, %p176
      %p178 = scmp.ne.s32.totalorder %s167, %s170
      %p179 = scmp.eq.s32.totalorder %s21, 1
      %p180 = por %p178, %p179
      %p181 = scmp.ne.s32.totalorder %s170, %s171
      %p182 = scmp.eq.s32.totalorder %s21, 0
      %p183 = por %p181, %p182
      %p184 = scmp.ne.s32.totalorder %s170, %s171
      %p185 = scmp.eq.s32.totalorder %s22, 1
      %p186 = por %p184, %p185
      %p188 = scmp.ne.s32.totalorder %s171, %s187
      %p189 = scmp.eq.s32.totalorder %s22, 0
      %p190 = por %p188, %p189
      %p191 = scmp.le.s32.totalorder 1, %s16
      %p192 = scmp.lt.s32.totalorder %s16, 3
      %p193 = pnand %p191, %p192
      %p194 = pneg %p193
      // Predicated region
      $region9: #{vector_quantizer_forward.1} parent=5 // pred_check
        _
      $region10: #{vector_quantizer_forward.1} parent=5 // pred_check_branch
        %196 = sbr.rel (%p193) target = $region12
      $region11: #{vector_quantizer_forward.1} parent=5 // pred_region
        %s197 = ssub.s32 %s16, 1
        // Predicated region
        $region13: #{vector_quantizer_forward.1} parent=11 // pred_check
          %p198 = pneg %p63
        $region14: #{vector_quantizer_forward.1} parent=11 // pred_check_branch
          %200 = sbr.rel (%p198) target = $region16
        $region15: #{vector_quantizer_forward.1} parent=11 // pred_region
          _
        $region16: #{vector_quantizer_forward.1} parent=11 // pred_fallthru
          _
        // Predicated region
        $region17: #{vector_quantizer_forward.1} parent=11 // pred_check
          %p201 = pneg %p84
        $region18: #{vector_quantizer_forward.1} parent=11 // pred_check_branch
          %203 = sbr.rel (%p201) target = $region20
        $region19: #{vector_quantizer_forward.1} parent=11 // pred_region
          _
        $region20: #{vector_quantizer_forward.1} parent=11 // pred_fallthru
          _
        // Predicated region
        $region21: #{vector_quantizer_forward.1} parent=11 // pred_check
          %p204 = pneg %p105
        $region22: #{vector_quantizer_forward.1} parent=11 // pred_check_branch
          %206 = sbr.rel (%p204) target = $region24
        $region23: #{vector_quantizer_forward.1} parent=11 // pred_region
          _
        $region24: #{vector_quantizer_forward.1} parent=11 // pred_fallthru
          _
      $region12: #{vector_quantizer_forward.1} parent=5 // pred_fallthru
        _
      %p207 = scmp.lt.s32.totalorder %s16, 2
      // Predicated region
      $region25: #{vector_quantizer_forward.1} parent=5 // pred_check
        %p208 = pneg %p207
      $region26: #{vector_quantizer_forward.1} parent=5 // pred_check_branch
        %210 = sbr.rel (%p208) target = $region28
      $region27: #{vector_quantizer_forward.1} parent=5 // pred_region
        // Predicated region
        $region29: #{vector_quantizer_forward.1} parent=27 // pred_check
          %p211 = pneg %p36
        $region30: #{vector_quantizer_forward.1} parent=27 // pred_check_branch
          %213 = sbr.rel (%p211) target = $region32
        $region31: #{vector_quantizer_forward.1} parent=27 // pred_region
          %s214 = smul.u32 2, %s16
          %p215 = scmp.lt.s32.totalorder %s214, 3
          %s216 = scalar_select %p215, %s214, 3
          %s217 = smul.addr %s216, 8
          %s218 = scalar_lea.vmem %s0, %s217
          %s219 = smul.u32 2, %s16
        $region32: #{vector_quantizer_forward.1} parent=27 // pred_fallthru
          _
      $region28: #{vector_quantizer_forward.1} parent=5 // pred_fallthru
        _
      %p220 = scmp.le.s32.totalorder 1, %s16
      %p221 = scmp.lt.s32.totalorder %s16, 3
      %p222 = pnand %p220, %p221
      %p223 = pneg %p222
      // Predicated region
      $region33: #{vector_quantizer_forward.1} parent=5 // pred_check
        _
      $region34: #{vector_quantizer_forward.1} parent=5 // pred_check_branch
        %225 = sbr.rel (%p222) target = $region36
      $region35: #{vector_quantizer_forward.1} parent=5 // pred_region
        %s226 = ssub.s32 %s16, 1
        %s227 = smul.u32 2, %s21
        %p228 = scmp.lt.s32.totalorder %s227, 3
        %s229 = scalar_select %p228, %s227, 3
        %s230 = smul.addr %s229, 8
        %s231 = scalar_lea.vmem %s0, %s230
        %p232 = pneg %p42
        %p233 = pneg %p39
        %p234 = pneg %p63
        %p235 = pneg %p60
        %p236 = pneg %p84
        %p237 = pneg %p81
        %p238 = pneg %p105
        %p239 = pneg %p102
        %p240 = pneg %p131
        %p241 = pneg %p128
        %s242 = smul.u32 2, %s21
        %p243 = scmp.lt.s32.totalorder %s242, 3
        %s244 = scalar_select %p243, %s242, 3
        %s245 = smul.addr %s244, 8
        %s246 = scalar_lea.vmem %s4, %s245
        %p247 = pneg %p157
        %p248 = pneg %p154
        %s249 = sand.u32 %s144, 1
        %s250 = scalar_lea.sflag [#allocation3], %s249
        %s251 = sand.u32 %s144, 1
        %s252 = smul.addr %s251, 2
        %s253 = scalar_lea.vmem [#allocation2], %s252
        %p254 = pneg %p183
        %p255 = pneg %p180
        %s256 = smul.u32 2, %s21
        %p257 = scmp.lt.s32.totalorder %s256, 3
        %s258 = scalar_select %p257, %s256, 3
        %s259 = scalar_lea.vmem %s6, %s258
        %s260 = smul.u32 2, %s21
        %p261 = scmp.lt.s32.totalorder %s260, 3
        %s262 = scalar_select %p261, %s260, 3
        %s263 = smul.addr %s262, 8
        %s264 = scalar_lea.vmem %s0, %s263
        %s265 = smul.u32 2, %s21
        %s266 = smul.u32 2, %s21
        %p267 = scmp.lt.s32.totalorder %s266, 3
        %s268 = scalar_select %p267, %s266, 3
        %s269 = smul.addr %s268, 8
        %s270 = scalar_lea.vmem %s4, %s269
        %s271 = smul.u32 2, %s21
        %s272 = smul.u32 2, %s21
        %s273 = smul.u32 2, %s21
        %p274 = scmp.lt.s32.totalorder %s273, 3
        %s275 = scalar_select %p274, %s273, 3
        %s276 = scalar_lea.vmem %s6, %s275
        %s277 = smul.u32 2, %s21
        %v278 = vld [vmem:[%s264] sm:$0xff]
        %v279 = vld [vmem:[%s264 + $0x8] sm:$0xff]
        %v280 = vld [vmem:[%s1] sm:$0xff]
        %v281 = vld [vmem:[%s1 + $0x8] sm:$0xff]
        %v282 = vld [vmem:[%s1 + $0x10] sm:$0xff]
        %v283 = vld [vmem:[%s1 + $0x18] sm:$0xff]
        %v284 = vld [vmem:[%s1 + $0x20] sm:$0xff]
        %v285 = vld [vmem:[%s1 + $0x28] sm:$0xff]
        %v286 = vld [vmem:[%s1 + $0x30] sm:$0xff]
        %v287 = vld [vmem:[%s1 + $0x38] sm:$0xff]
        %v288 = vld [vmem:[%s1 + $0x40] sm:$0xff]
        %v289 = vld [vmem:[%s1 + $0x48] sm:$0xff]
        %v290 = vld [vmem:[%s1 + $0x50] sm:$0xff]
        %v291 = vld [vmem:[%s1 + $0x58] sm:$0xff]
        %v292 = vld [vmem:[%s1 + $0x60] sm:$0xff]
        %v293 = vld [vmem:[%s1 + $0x68] sm:$0xff]
        %v294 = vld [vmem:[%s1 + $0x70] sm:$0xff]
        %v295 = vld [vmem:[%s1 + $0x78] sm:$0xff]
        %v296 = vld [vmem:[%s1 + $0x80] sm:$0xff]
        %v297 = vld [vmem:[%s1 + $0x88] sm:$0xff]
        %v298 = vld [vmem:[%s1 + $0x90] sm:$0xff]
        %v299 = vld [vmem:[%s1 + $0x98] sm:$0xff]
        %v300 = vld [vmem:[%s1 + $0xa0] sm:$0xff]
        %v301 = vld [vmem:[%s1 + $0xa8] sm:$0xff]
        %v302 = vld [vmem:[%s1 + $0xb0] sm:$0xff]
        %v303 = vld [vmem:[%s1 + $0xb8] sm:$0xff]
        %v304 = vld [vmem:[%s1 + $0xc0] sm:$0xff]
        %v305 = vld [vmem:[%s1 + $0xc8] sm:$0xff]
        %v306 = vld [vmem:[%s1 + $0xd0] sm:$0xff]
        %v307 = vld [vmem:[%s1 + $0xd8] sm:$0xff]
        %v308 = vld [vmem:[%s1 + $0xe0] sm:$0xff]
        %v309 = vld [vmem:[%s1 + $0xe8] sm:$0xff]
        %v310 = vld [vmem:[%s1 + $0xf0] sm:$0xff]
        %v311 = vld [vmem:[%s1 + $0xf8] sm:$0xff]
        %v312 = vld [vmem:[%s3] sm:$0xff]
        %v313 = vld [vmem:[%s3 + $0x8] sm:$0xff]
        %v314 = vld [vmem:[%s3 + $0x10] sm:$0xff]
        %v315 = vld [vmem:[%s3 + $0x18] sm:$0xff]
        %v316 = vld [vmem:[%s3 + $0x20] sm:$0xff]
        %v317 = vld [vmem:[%s3 + $0x28] sm:$0xff]
        %v318 = vld [vmem:[%s3 + $0x30] sm:$0xff]
        %v319 = vld [vmem:[%s3 + $0x38] sm:$0xff]
        %v320 = vld [vmem:[%s3 + $0x40] sm:$0xff]
        %v321 = vld [vmem:[%s3 + $0x48] sm:$0xff]
        %v322 = vld [vmem:[%s3 + $0x50] sm:$0xff]
        %v323 = vld [vmem:[%s3 + $0x58] sm:$0xff]
        %v324 = vld [vmem:[%s3 + $0x60] sm:$0xff]
        %v325 = vld [vmem:[%s3 + $0x68] sm:$0xff]
        %v326 = vld [vmem:[%s3 + $0x70] sm:$0xff]
        %v327 = vld [vmem:[%s3 + $0x78] sm:$0xff]
        %v328 = vld [vmem:[%s3 + $0x80] sm:$0xff]
        %v329 = vld [vmem:[%s3 + $0x88] sm:$0xff]
        %v330 = vld [vmem:[%s3 + $0x90] sm:$0xff]
        %v331 = vld [vmem:[%s3 + $0x98] sm:$0xff]
        %v332 = vld [vmem:[%s3 + $0xa0] sm:$0xff]
        %v333 = vld [vmem:[%s3 + $0xa8] sm:$0xff]
        %v334 = vld [vmem:[%s3 + $0xb0] sm:$0xff]
        %v335 = vld [vmem:[%s3 + $0xb8] sm:$0xff]
        %v336 = vld [vmem:[%s3 + $0xc0] sm:$0xff]
        %v337 = vld [vmem:[%s3 + $0xc8] sm:$0xff]
        %v338 = vld [vmem:[%s3 + $0xd0] sm:$0xff]
        %v339 = vld [vmem:[%s3 + $0xd8] sm:$0xff]
        %v340 = vld [vmem:[%s3 + $0xe0] sm:$0xff]
        %v341 = vld [vmem:[%s3 + $0xe8] sm:$0xff]
        %v342 = vld [vmem:[%s3 + $0xf0] sm:$0xff]
        %v343 = vld [vmem:[%s3 + $0xf8] sm:$0xff]
        %vm344 = vcmask 64512
        %v346 = vsel %vm344, %v280, 0
        %v349 = vsel %vm344, %v281, 0
        %v352 = vsel %vm344, %v282, 0
        %v355 = vsel %vm344, %v283, 0
        %v358 = vsel %vm344, %v284, 0
        %v361 = vsel %vm344, %v285, 0
        %v364 = vsel %vm344, %v286, 0
        %v367 = vsel %vm344, %v287, 0
        %v370 = vsel %vm344, %v288, 0
        %v373 = vsel %vm344, %v289, 0
        %v376 = vsel %vm344, %v290, 0
        %v379 = vsel %vm344, %v291, 0
        %v382 = vsel %vm344, %v292, 0
        %v385 = vsel %vm344, %v293, 0
        %v388 = vsel %vm344, %v294, 0
        %v391 = vsel %vm344, %v295, 0
        %v394 = vsel %vm344, %v296, 0
        %v397 = vsel %vm344, %v297, 0
        %v400 = vsel %vm344, %v298, 0
        %v403 = vsel %vm344, %v299, 0
        %v406 = vsel %vm344, %v300, 0
        %v409 = vsel %vm344, %v301, 0
        %v412 = vsel %vm344, %v302, 0
        %v415 = vsel %vm344, %v303, 0
        %v418 = vsel %vm344, %v304, 0
        %v421 = vsel %vm344, %v305, 0
        %v424 = vsel %vm344, %v306, 0
        %v427 = vsel %vm344, %v307, 0
        %v430 = vsel %vm344, %v308, 0
        %v433 = vsel %vm344, %v309, 0
        %v436 = vsel %vm344, %v310, 0
        %v439 = vsel %vm344, %v311, 0
        %441 = vmatprep.subr.mxu0 0.0
        %442 = vmatpush1.msra.mxu0 0.0
        %443 = vmatprep.subr.mxu0 0.0
        %444 = vmatpush1.msra.mxu0 0.0
        %445 = vmatprep.subr.mxu0 0.0
        %446 = vmatpush1.msra.mxu0 0.0
        %447 = vmatprep.subr.mxu0 0.0
        %448 = vmatpush1.msra.mxu0 0.0
        %449 = vmatprep.subr.mxu0 0.0
        %450 = vmatpush1.msra.mxu0 0.0
        %451 = vmatprep.subr.mxu0 0.0
        %452 = vmatpush1.msra.mxu0 0.0
        %453 = vmatprep.subr.mxu0 0.0
        %454 = vmatpush1.msra.mxu0 0.0
        %455 = vmatprep.subr.mxu0 0.0
        %456 = vmatpush1.msra.mxu0 0.0
        %457 = vmatprep.subr.mxu0 0.0
        %458 = vmatpush1.msra.mxu0 0.0
        %459 = vmatprep.subr.mxu0 0.0
        %460 = vmatpush1.msra.mxu0 0.0
        %461 = vmatprep.subr.mxu0 0.0
        %462 = vmatpush1.msra.mxu0 0.0
        %463 = vmatprep.subr.mxu0 0.0
        %464 = vmatpush1.msra.mxu0 0.0
        %465 = vmatprep.subr.mxu0 0.0
        %466 = vmatpush1.msra.mxu0 0.0
        %467 = vmatprep.subr.mxu0 0.0
        %468 = vmatpush1.msra.mxu0 0.0
        %469 = vmatprep.subr.mxu0 0.0
        %470 = vmatpush1.msra.mxu0 0.0
        %471 = vmatprep.subr.mxu0 %v279
        %472 = vmatpush1.msra.mxu0 %v278
        %473 = vmatprep.subr.mxu0 0.0
        %474 = vmatpush2.msra.mxu0 0.0
        %475 = vmatprep.subr.mxu0 0.0
        %476 = vmatpush2.msra.mxu0 0.0
        %477 = vmatprep.subr.mxu0 0.0
        %478 = vmatpush2.msra.mxu0 0.0
        %479 = vmatprep.subr.mxu0 0.0
        %480 = vmatpush2.msra.mxu0 0.0
        %481 = vmatprep.subr.mxu0 0.0
        %482 = vmatpush2.msra.mxu0 0.0
        %483 = vmatprep.subr.mxu0 0.0
        %484 = vmatpush2.msra.mxu0 0.0
        %485 = vmatprep.subr.mxu0 0.0
        %486 = vmatpush2.msra.mxu0 0.0
        %487 = vmatprep.subr.mxu0 0.0
        %488 = vmatpush2.msra.mxu0 0.0
        %489 = vmatprep.subr.mxu0 0.0
        %490 = vmatpush2.msra.mxu0 0.0
        %491 = vmatprep.subr.mxu0 0.0
        %492 = vmatpush2.msra.mxu0 0.0
        %493 = vmatprep.subr.mxu0 0.0
        %494 = vmatpush2.msra.mxu0 0.0
        %495 = vmatprep.subr.mxu0 0.0
        %496 = vmatpush2.msra.mxu0 0.0
        %497 = vmatprep.subr.mxu0 0.0
        %498 = vmatpush2.msra.mxu0 0.0
        %499 = vmatprep.subr.mxu0 0.0
        %500 = vmatpush2.msra.mxu0 0.0
        %501 = vmatprep.subr.mxu0 0.0
        %502 = vmatpush2.msra.mxu0 0.0
        %503 = vmatprep.subr.mxu0 0.0
        %504 = vmatpush2.msra.mxu0 0.0
        %505 = vmatprep.mubr.f32.mxu0 0.0
        %506 = vmatmul.mubr.f32.gmra.mxu0 %v346
        %v507 = vpop.f32.mrf.mxu0
        %v508 = vadd.f32 0.0, %v507
        %v509 = vpop.f32.mrf.mxu0
        %v510 = vadd.f32 0.0, %v509
        %511 = vmatprep.mubr.f32.mxu0 0.0
        %512 = vmatmul.mubr.f32.gmra.mxu0 %v349
        %v513 = vpop.f32.mrf.mxu0
        %v514 = vadd.f32 0.0, %v513
        %v515 = vpop.f32.mrf.mxu0
        %v516 = vadd.f32 0.0, %v515
        %517 = vmatprep.mubr.f32.mxu0 0.0
        %518 = vmatmul.mubr.f32.gmra.mxu0 %v352
        %v519 = vpop.f32.mrf.mxu0
        %v520 = vadd.f32 0.0, %v519
        %v521 = vpop.f32.mrf.mxu0
        %v522 = vadd.f32 0.0, %v521
        %523 = vmatprep.mubr.f32.mxu0 0.0
        %524 = vmatmul.mubr.f32.gmra.mxu0 %v355
        %v525 = vpop.f32.mrf.mxu0
        %v526 = vadd.f32 0.0, %v525
        %v527 = vpop.f32.mrf.mxu0
        %v528 = vadd.f32 0.0, %v527
        %529 = vmatprep.mubr.f32.mxu0 0.0
        %530 = vmatmul.mubr.f32.gmra.mxu0 %v358
        %v531 = vpop.f32.mrf.mxu0
        %v532 = vadd.f32 0.0, %v531
        %v533 = vpop.f32.mrf.mxu0
        %v534 = vadd.f32 0.0, %v533
        %535 = vmatprep.mubr.f32.mxu0 0.0
        %536 = vmatmul.mubr.f32.gmra.mxu0 %v361
        %v537 = vpop.f32.mrf.mxu0
        %v538 = vadd.f32 0.0, %v537
        %v539 = vpop.f32.mrf.mxu0
        %v540 = vadd.f32 0.0, %v539
        %541 = vmatprep.mubr.f32.mxu0 0.0
        %542 = vmatmul.mubr.f32.gmra.mxu0 %v364
        %v543 = vpop.f32.mrf.mxu0
        %v544 = vadd.f32 0.0, %v543
        %v545 = vpop.f32.mrf.mxu0
        %v546 = vadd.f32 0.0, %v545
        %547 = vmatprep.mubr.f32.mxu0 0.0
        %548 = vmatmul.mubr.f32.gmra.mxu0 %v367
        %v549 = vpop.f32.mrf.mxu0
        %v550 = vadd.f32 0.0, %v549
        %v551 = vpop.f32.mrf.mxu0
        %v552 = vadd.f32 0.0, %v551
        %553 = vmatprep.mubr.f32.mxu0 0.0
        %554 = vmatmul.mubr.f32.gmra.mxu0 %v370
        %v555 = vpop.f32.mrf.mxu0
        %v556 = vadd.f32 0.0, %v555
        %v557 = vpop.f32.mrf.mxu0
        %v558 = vadd.f32 0.0, %v557
        %559 = vmatprep.mubr.f32.mxu0 0.0
        %560 = vmatmul.mubr.f32.gmra.mxu0 %v373
        %v561 = vpop.f32.mrf.mxu0
        %v562 = vadd.f32 0.0, %v561
        %v563 = vpop.f32.mrf.mxu0
        %v564 = vadd.f32 0.0, %v563
        %565 = vmatprep.mubr.f32.mxu0 0.0
        %566 = vmatmul.mubr.f32.gmra.mxu0 %v376
        %v567 = vpop.f32.mrf.mxu0
        %v568 = vadd.f32 0.0, %v567
        %v569 = vpop.f32.mrf.mxu0
        %v570 = vadd.f32 0.0, %v569
        %571 = vmatprep.mubr.f32.mxu0 0.0
        %572 = vmatmul.mubr.f32.gmra.mxu0 %v379
        %v573 = vpop.f32.mrf.mxu0
        %v574 = vadd.f32 0.0, %v573
        %v575 = vpop.f32.mrf.mxu0
        %v576 = vadd.f32 0.0, %v575
        %577 = vmatprep.mubr.f32.mxu0 0.0
        %578 = vmatmul.mubr.f32.gmra.mxu0 %v382
        %v579 = vpop.f32.mrf.mxu0
        %v580 = vadd.f32 0.0, %v579
        %v581 = vpop.f32.mrf.mxu0
        %v582 = vadd.f32 0.0, %v581
        %583 = vmatprep.mubr.f32.mxu0 0.0
        %584 = vmatmul.mubr.f32.gmra.mxu0 %v385
        %v585 = vpop.f32.mrf.mxu0
        %v586 = vadd.f32 0.0, %v585
        %v587 = vpop.f32.mrf.mxu0
        %v588 = vadd.f32 0.0, %v587
        %589 = vmatprep.mubr.f32.mxu0 0.0
        %590 = vmatmul.mubr.f32.gmra.mxu0 %v388
        %v591 = vpop.f32.mrf.mxu0
        %v592 = vadd.f32 0.0, %v591
        %v593 = vpop.f32.mrf.mxu0
        %v594 = vadd.f32 0.0, %v593
        %595 = vmatprep.mubr.f32.mxu0 0.0
        %596 = vmatmul.mubr.f32.gmra.mxu0 %v391
        %v597 = vpop.f32.mrf.mxu0
        %v598 = vadd.f32 0.0, %v597
        %v599 = vpop.f32.mrf.mxu0
        %v600 = vadd.f32 0.0, %v599
        %601 = vmatprep.mubr.f32.mxu0 0.0
        %602 = vmatmul.mubr.f32.gmra.mxu0 %v394
        %v603 = vpop.f32.mrf.mxu0
        %v604 = vadd.f32 0.0, %v603
        %v605 = vpop.f32.mrf.mxu0
        %v606 = vadd.f32 0.0, %v605
        %607 = vmatprep.mubr.f32.mxu0 0.0
        %608 = vmatmul.mubr.f32.gmra.mxu0 %v397
        %v609 = vpop.f32.mrf.mxu0
        %v610 = vadd.f32 0.0, %v609
        %v611 = vpop.f32.mrf.mxu0
        %v612 = vadd.f32 0.0, %v611
        %613 = vmatprep.mubr.f32.mxu0 0.0
        %614 = vmatmul.mubr.f32.gmra.mxu0 %v400
        %v615 = vpop.f32.mrf.mxu0
        %v616 = vadd.f32 0.0, %v615
        %v617 = vpop.f32.mrf.mxu0
        %v618 = vadd.f32 0.0, %v617
        %619 = vmatprep.mubr.f32.mxu0 0.0
        %620 = vmatmul.mubr.f32.gmra.mxu0 %v403
        %v621 = vpop.f32.mrf.mxu0
        %v622 = vadd.f32 0.0, %v621
        %v623 = vpop.f32.mrf.mxu0
        %v624 = vadd.f32 0.0, %v623
        %625 = vmatprep.mubr.f32.mxu0 0.0
        %626 = vmatmul.mubr.f32.gmra.mxu0 %v406
        %v627 = vpop.f32.mrf.mxu0
        %v628 = vadd.f32 0.0, %v627
        %v629 = vpop.f32.mrf.mxu0
        %v630 = vadd.f32 0.0, %v629
        %631 = vmatprep.mubr.f32.mxu0 0.0
        %632 = vmatmul.mubr.f32.gmra.mxu0 %v409
        %v633 = vpop.f32.mrf.mxu0
        %v634 = vadd.f32 0.0, %v633
        %v635 = vpop.f32.mrf.mxu0
        %v636 = vadd.f32 0.0, %v635
        %637 = vmatprep.mubr.f32.mxu0 0.0
        %638 = vmatmul.mubr.f32.gmra.mxu0 %v412
        %v639 = vpop.f32.mrf.mxu0
        %v640 = vadd.f32 0.0, %v639
        %v641 = vpop.f32.mrf.mxu0
        %v642 = vadd.f32 0.0, %v641
        %643 = vmatprep.mubr.f32.mxu0 0.0
        %644 = vmatmul.mubr.f32.gmra.mxu0 %v415
        %v645 = vpop.f32.mrf.mxu0
        %v646 = vadd.f32 0.0, %v645
        %v647 = vpop.f32.mrf.mxu0
        %v648 = vadd.f32 0.0, %v647
        %649 = vmatprep.mubr.f32.mxu0 0.0
        %650 = vmatmul.mubr.f32.gmra.mxu0 %v418
        %v651 = vpop.f32.mrf.mxu0
        %v652 = vadd.f32 0.0, %v651
        %v653 = vpop.f32.mrf.mxu0
        %v654 = vadd.f32 0.0, %v653
        %655 = vmatprep.mubr.f32.mxu0 0.0
        %656 = vmatmul.mubr.f32.gmra.mxu0 %v421
        %v657 = vpop.f32.mrf.mxu0
        %v658 = vadd.f32 0.0, %v657
        %v659 = vpop.f32.mrf.mxu0
        %v660 = vadd.f32 0.0, %v659
        %661 = vmatprep.mubr.f32.mxu0 0.0
        %662 = vmatmul.mubr.f32.gmra.mxu0 %v424
        %v663 = vpop.f32.mrf.mxu0
        %v664 = vadd.f32 0.0, %v663
        %v665 = vpop.f32.mrf.mxu0
        %v666 = vadd.f32 0.0, %v665
        %667 = vmatprep.mubr.f32.mxu0 0.0
        %668 = vmatmul.mubr.f32.gmra.mxu0 %v427
        %v669 = vpop.f32.mrf.mxu0
        %v670 = vadd.f32 0.0, %v669
        %v671 = vpop.f32.mrf.mxu0
        %v672 = vadd.f32 0.0, %v671
        %673 = vmatprep.mubr.f32.mxu0 0.0
        %674 = vmatmul.mubr.f32.gmra.mxu0 %v430
        %v675 = vpop.f32.mrf.mxu0
        %v676 = vadd.f32 0.0, %v675
        %v677 = vpop.f32.mrf.mxu0
        %v678 = vadd.f32 0.0, %v677
        %679 = vmatprep.mubr.f32.mxu0 0.0
        %680 = vmatmul.mubr.f32.gmra.mxu0 %v433
        %v681 = vpop.f32.mrf.mxu0
        %v682 = vadd.f32 0.0, %v681
        %v683 = vpop.f32.mrf.mxu0
        %v684 = vadd.f32 0.0, %v683
        %685 = vmatprep.mubr.f32.mxu0 0.0
        %686 = vmatmul.mubr.f32.gmra.mxu0 %v436
        %v687 = vpop.f32.mrf.mxu0
        %v688 = vadd.f32 0.0, %v687
        %v689 = vpop.f32.mrf.mxu0
        %v690 = vadd.f32 0.0, %v689
        %691 = vmatprep.mubr.f32.mxu0 0.0
        %692 = vmatmul.mubr.f32.gmra.mxu0 %v439
        %v693 = vpop.f32.mrf.mxu0
        %v694 = vadd.f32 0.0, %v693
        %v695 = vpop.f32.mrf.mxu0
        %v696 = vadd.f32 0.0, %v695
        %697 = vdwg.mxu0
        %v698 = vmul.f32 %v508, 2.0
        %v699 = vmul.f32 %v510, 2.0
        %v700 = vmul.f32 %v514, 2.0
        %v701 = vmul.f32 %v516, 2.0
        %v702 = vmul.f32 %v520, 2.0
        %v703 = vmul.f32 %v522, 2.0
        %v704 = vmul.f32 %v526, 2.0
        %v705 = vmul.f32 %v528, 2.0
        %v706 = vmul.f32 %v532, 2.0
        %v707 = vmul.f32 %v534, 2.0
        %v708 = vmul.f32 %v538, 2.0
        %v709 = vmul.f32 %v540, 2.0
        %v710 = vmul.f32 %v544, 2.0
        %v711 = vmul.f32 %v546, 2.0
        %v712 = vmul.f32 %v550, 2.0
        %v713 = vmul.f32 %v552, 2.0
        %v714 = vmul.f32 %v556, 2.0
        %v715 = vmul.f32 %v558, 2.0
        %v716 = vmul.f32 %v562, 2.0
        %v717 = vmul.f32 %v564, 2.0
        %v718 = vmul.f32 %v568, 2.0
        %v719 = vmul.f32 %v570, 2.0
        %v720 = vmul.f32 %v574, 2.0
        %v721 = vmul.f32 %v576, 2.0
        %v722 = vmul.f32 %v580, 2.0
        %v723 = vmul.f32 %v582, 2.0
        %v724 = vmul.f32 %v586, 2.0
        %v725 = vmul.f32 %v588, 2.0
        %v726 = vmul.f32 %v592, 2.0
        %v727 = vmul.f32 %v594, 2.0
        %v728 = vmul.f32 %v598, 2.0
        %v729 = vmul.f32 %v600, 2.0
        %v730 = vmul.f32 %v604, 2.0
        %v731 = vmul.f32 %v606, 2.0
        %v732 = vmul.f32 %v610, 2.0
        %v733 = vmul.f32 %v612, 2.0
        %v734 = vmul.f32 %v616, 2.0
        %v735 = vmul.f32 %v618, 2.0
        %v736 = vmul.f32 %v622, 2.0
        %v737 = vmul.f32 %v624, 2.0
        %v738 = vmul.f32 %v628, 2.0
        %v739 = vmul.f32 %v630, 2.0
        %v740 = vmul.f32 %v634, 2.0
        %v741 = vmul.f32 %v636, 2.0
        %v742 = vmul.f32 %v640, 2.0
        %v743 = vmul.f32 %v642, 2.0
        %v744 = vmul.f32 %v646, 2.0
        %v745 = vmul.f32 %v648, 2.0
        %v746 = vmul.f32 %v652, 2.0
        %v747 = vmul.f32 %v654, 2.0
        %v748 = vmul.f32 %v658, 2.0
        %v749 = vmul.f32 %v660, 2.0
        %v750 = vmul.f32 %v664, 2.0
        %v751 = vmul.f32 %v666, 2.0
        %v752 = vmul.f32 %v670, 2.0
        %v753 = vmul.f32 %v672, 2.0
        %v754 = vmul.f32 %v676, 2.0
        %v755 = vmul.f32 %v678, 2.0
        %v756 = vmul.f32 %v682, 2.0
        %v757 = vmul.f32 %v684, 2.0
        %v758 = vmul.f32 %v688, 2.0
        %v759 = vmul.f32 %v690, 2.0
        %v760 = vmul.f32 %v694, 2.0
        %v761 = vmul.f32 %v696, 2.0
        %763 = vset.pattern.permute.xlu0 0
        %764 = vperm.xlu0 %763, %v312
        %v765 = vpop.permute.xlu0 %764
        %768 = vset.pattern.permute.xlu0 0
        %769 = vperm.xlu0 %768, %v313
        %v770 = vpop.permute.xlu0 %769
        %773 = vset.pattern.permute.xlu0 0
        %774 = vperm.xlu0 %773, %v314
        %v775 = vpop.permute.xlu0 %774
        %778 = vset.pattern.permute.xlu0 0
        %779 = vperm.xlu0 %778, %v315
        %v780 = vpop.permute.xlu0 %779
        %783 = vset.pattern.permute.xlu0 0
        %784 = vperm.xlu0 %783, %v316
        %v785 = vpop.permute.xlu0 %784
        %788 = vset.pattern.permute.xlu0 0
        %789 = vperm.xlu0 %788, %v317
        %v790 = vpop.permute.xlu0 %789
        %793 = vset.pattern.permute.xlu0 0
        %794 = vperm.xlu0 %793, %v318
        %v795 = vpop.permute.xlu0 %794
        %798 = vset.pattern.permute.xlu0 0
        %799 = vperm.xlu0 %798, %v319
        %v800 = vpop.permute.xlu0 %799
        %803 = vset.pattern.permute.xlu0 0
        %804 = vperm.xlu0 %803, %v320
        %v805 = vpop.permute.xlu0 %804
        %808 = vset.pattern.permute.xlu0 0
        %809 = vperm.xlu0 %808, %v321
        %v810 = vpop.permute.xlu0 %809
        %813 = vset.pattern.permute.xlu0 0
        %814 = vperm.xlu0 %813, %v322
        %v815 = vpop.permute.xlu0 %814
        %818 = vset.pattern.permute.xlu0 0
        %819 = vperm.xlu0 %818, %v323
        %v820 = vpop.permute.xlu0 %819
        %823 = vset.pattern.permute.xlu0 0
        %824 = vperm.xlu0 %823, %v324
        %v825 = vpop.permute.xlu0 %824
        %828 = vset.pattern.permute.xlu0 0
        %829 = vperm.xlu0 %828, %v325
        %v830 = vpop.permute.xlu0 %829
        %833 = vset.pattern.permute.xlu0 0
        %834 = vperm.xlu0 %833, %v326
        %v835 = vpop.permute.xlu0 %834
        %838 = vset.pattern.permute.xlu0 0
        %839 = vperm.xlu0 %838, %v327
        %v840 = vpop.permute.xlu0 %839
        %843 = vset.pattern.permute.xlu0 0
        %844 = vperm.xlu0 %843, %v328
        %v845 = vpop.permute.xlu0 %844
        %848 = vset.pattern.permute.xlu0 0
        %849 = vperm.xlu0 %848, %v329
        %v850 = vpop.permute.xlu0 %849
        %853 = vset.pattern.permute.xlu0 0
        %854 = vperm.xlu0 %853, %v330
        %v855 = vpop.permute.xlu0 %854
        %858 = vset.pattern.permute.xlu0 0
        %859 = vperm.xlu0 %858, %v331
        %v860 = vpop.permute.xlu0 %859
        %863 = vset.pattern.permute.xlu0 0
        %864 = vperm.xlu0 %863, %v332
        %v865 = vpop.permute.xlu0 %864
        %868 = vset.pattern.permute.xlu0 0
        %869 = vperm.xlu0 %868, %v333
        %v870 = vpop.permute.xlu0 %869
        %873 = vset.pattern.permute.xlu0 0
        %874 = vperm.xlu0 %873, %v334
        %v875 = vpop.permute.xlu0 %874
        %878 = vset.pattern.permute.xlu0 0
        %879 = vperm.xlu0 %878, %v335
        %v880 = vpop.permute.xlu0 %879
        %883 = vset.pattern.permute.xlu0 0
        %884 = vperm.xlu0 %883, %v336
        %v885 = vpop.permute.xlu0 %884
        %888 = vset.pattern.permute.xlu0 0
        %889 = vperm.xlu0 %888, %v337
        %v890 = vpop.permute.xlu0 %889
        %893 = vset.pattern.permute.xlu0 0
        %894 = vperm.xlu0 %893, %v338
        %v895 = vpop.permute.xlu0 %894
        %898 = vset.pattern.permute.xlu0 0
        %899 = vperm.xlu0 %898, %v339
        %v900 = vpop.permute.xlu0 %899
        %903 = vset.pattern.permute.xlu0 0
        %904 = vperm.xlu0 %903, %v340
        %v905 = vpop.permute.xlu0 %904
        %908 = vset.pattern.permute.xlu0 0
        %909 = vperm.xlu0 %908, %v341
        %v910 = vpop.permute.xlu0 %909
        %913 = vset.pattern.permute.xlu0 0
        %914 = vperm.xlu0 %913, %v342
        %v915 = vpop.permute.xlu0 %914
        %918 = vset.pattern.permute.xlu0 0
        %919 = vperm.xlu0 %918, %v343
        %v920 = vpop.permute.xlu0 %919
        %v922 = vsub.f32 %v765, %v698
        %v923 = vsub.f32 %v765, %v699
        %v924 = vsub.f32 %v770, %v700
        %v925 = vsub.f32 %v770, %v701
        %v926 = vsub.f32 %v775, %v702
        %v927 = vsub.f32 %v775, %v703
        %v928 = vsub.f32 %v780, %v704
        %v929 = vsub.f32 %v780, %v705
        %v930 = vsub.f32 %v785, %v706
        %v931 = vsub.f32 %v785, %v707
        %v932 = vsub.f32 %v790, %v708
        %v933 = vsub.f32 %v790, %v709
        %v934 = vsub.f32 %v795, %v710
        %v935 = vsub.f32 %v795, %v711
        %v936 = vsub.f32 %v800, %v712
        %v937 = vsub.f32 %v800, %v713
        %v938 = vsub.f32 %v805, %v714
        %v939 = vsub.f32 %v805, %v715
        %v940 = vsub.f32 %v810, %v716
        %v941 = vsub.f32 %v810, %v717
        %v942 = vsub.f32 %v815, %v718
        %v943 = vsub.f32 %v815, %v719
        %v944 = vsub.f32 %v820, %v720
        %v945 = vsub.f32 %v820, %v721
        %v946 = vsub.f32 %v825, %v722
        %v947 = vsub.f32 %v825, %v723
        %v948 = vsub.f32 %v830, %v724
        %v949 = vsub.f32 %v830, %v725
        %v950 = vsub.f32 %v835, %v726
        %v951 = vsub.f32 %v835, %v727
        %v952 = vsub.f32 %v840, %v728
        %v953 = vsub.f32 %v840, %v729
        %v954 = vsub.f32 %v845, %v730
        %v955 = vsub.f32 %v845, %v731
        %v956 = vsub.f32 %v850, %v732
        %v957 = vsub.f32 %v850, %v733
        %v958 = vsub.f32 %v855, %v734
        %v959 = vsub.f32 %v855, %v735
        %v960 = vsub.f32 %v860, %v736
        %v961 = vsub.f32 %v860, %v737
        %v962 = vsub.f32 %v865, %v738
        %v963 = vsub.f32 %v865, %v739
        %v964 = vsub.f32 %v870, %v740
        %v965 = vsub.f32 %v870, %v741
        %v966 = vsub.f32 %v875, %v742
        %v967 = vsub.f32 %v875, %v743
        %v968 = vsub.f32 %v880, %v744
        %v969 = vsub.f32 %v880, %v745
        %v970 = vsub.f32 %v885, %v746
        %v971 = vsub.f32 %v885, %v747
        %v972 = vsub.f32 %v890, %v748
        %v973 = vsub.f32 %v890, %v749
        %v974 = vsub.f32 %v895, %v750
        %v975 = vsub.f32 %v895, %v751
        %v976 = vsub.f32 %v900, %v752
        %v977 = vsub.f32 %v900, %v753
        %v978 = vsub.f32 %v905, %v754
        %v979 = vsub.f32 %v905, %v755
        %v980 = vsub.f32 %v910, %v756
        %v981 = vsub.f32 %v910, %v757
        %v982 = vsub.f32 %v915, %v758
        %v983 = vsub.f32 %v915, %v759
        %v984 = vsub.f32 %v920, %v760
        %v985 = vsub.f32 %v920, %v761
        %v986 = vmin.f32 %v922, %v926
        %v987 = vmin.f32 %v924, %v928
        %v988 = vmin.f32 %v986, %v930
        %v989 = vmin.f32 %v987, %v932
        %v990 = vmin.f32 %v988, %v934
        %v991 = vmin.f32 %v989, %v936
        %v992 = vmin.f32 %v990, %v938
        %v993 = vmin.f32 %v991, %v940
        %v994 = vmin.f32 %v992, %v942
        %v995 = vmin.f32 %v993, %v944
        %v996 = vmin.f32 %v994, %v946
        %v997 = vmin.f32 %v995, %v948
        %v998 = vmin.f32 %v996, %v950
        %v999 = vmin.f32 %v997, %v952
        %v1000 = vmin.f32 %v998, %v954
        %v1001 = vmin.f32 %v999, %v956
        %v1002 = vmin.f32 %v1000, %v958
        %v1003 = vmin.f32 %v1001, %v960
        %v1004 = vmin.f32 %v1002, %v962
        %v1005 = vmin.f32 %v1003, %v964
        %v1006 = vmin.f32 %v1004, %v966
        %v1007 = vmin.f32 %v1005, %v968
        %v1008 = vmin.f32 %v1006, %v970
        %v1009 = vmin.f32 %v1007, %v972
        %v1010 = vmin.f32 %v1008, %v974
        %v1011 = vmin.f32 %v1009, %v976
        %v1012 = vmin.f32 %v1010, %v978
        %v1013 = vmin.f32 %v1011, %v980
        %v1014 = vmin.f32 %v1012, %v982
        %v1015 = vmin.f32 %v1013, %v984
        %v1016 = vmin.f32 %v1014, %v1015
        %v1017 = vrot.slane %v1016, 4
        %v1018 = vmin.f32 %v1016, %v1017
        %v1019 = vrot.slane %v1018, 2
        %v1020 = vmin.f32 %v1018, %v1019
        %v1021 = vrot.slane %v1020, 1
        %v1022 = vmin.f32 %v1020, %v1021
        %v1023 = vmin.f32 %v923, %v927
        %v1024 = vmin.f32 %v925, %v929
        %v1025 = vmin.f32 %v1023, %v931
        %v1026 = vmin.f32 %v1024, %v933
        %v1027 = vmin.f32 %v1025, %v935
        %v1028 = vmin.f32 %v1026, %v937
        %v1029 = vmin.f32 %v1027, %v939
        %v1030 = vmin.f32 %v1028, %v941
        %v1031 = vmin.f32 %v1029, %v943
        %v1032 = vmin.f32 %v1030, %v945
        %v1033 = vmin.f32 %v1031, %v947
        %v1034 = vmin.f32 %v1032, %v949
        %v1035 = vmin.f32 %v1033, %v951
        %v1036 = vmin.f32 %v1034, %v953
        %v1037 = vmin.f32 %v1035, %v955
        %v1038 = vmin.f32 %v1036, %v957
        %v1039 = vmin.f32 %v1037, %v959
        %v1040 = vmin.f32 %v1038, %v961
        %v1041 = vmin.f32 %v1039, %v963
        %v1042 = vmin.f32 %v1040, %v965
        %v1043 = vmin.f32 %v1041, %v967
        %v1044 = vmin.f32 %v1042, %v969
        %v1045 = vmin.f32 %v1043, %v971
        %v1046 = vmin.f32 %v1044, %v973
        %v1047 = vmin.f32 %v1045, %v975
        %v1048 = vmin.f32 %v1046, %v977
        %v1049 = vmin.f32 %v1047, %v979
        %v1050 = vmin.f32 %v1048, %v981
        %v1051 = vmin.f32 %v1049, %v983
        %v1052 = vmin.f32 %v1050, %v985
        %v1053 = vmin.f32 %v1051, %v1052
        %v1054 = vrot.slane %v1053, 4
        %v1055 = vmin.f32 %v1053, %v1054
        %v1056 = vrot.slane %v1055, 2
        %v1057 = vmin.f32 %v1055, %v1056
        %v1058 = vrot.slane %v1057, 1
        %v1059 = vmin.f32 %v1057, %v1058
        %v1060 = vlaneseq
        %v1061 = vshrl.u32 %v1060, 7
        %v1062 = vadd.s32 %v1061, 8
        %v1063 = vadd.s32 %v1061, 16
        %v1064 = vadd.s32 %v1061, 24
        %v1065 = vadd.s32 %v1061, 32
        %v1066 = vadd.s32 %v1061, 40
        %v1067 = vadd.s32 %v1061, 48
        %v1068 = vadd.s32 %v1061, 56
        %v1069 = vadd.s32 %v1061, 64
        %v1070 = vadd.s32 %v1061, 72
        %v1071 = vadd.s32 %v1061, 80
        %v1072 = vadd.s32 %v1061, 88
        %v1073 = vadd.s32 %v1061, 96
        %v1074 = vadd.s32 %v1061, 104
        %v1075 = vadd.s32 %v1061, 112
        %v1076 = vadd.s32 %v1061, 120
        %v1077 = vadd.s32 %v1061, 128
        %v1078 = vadd.s32 %v1061, 136
        %v1079 = vadd.s32 %v1061, 144
        %v1080 = vadd.s32 %v1061, 152
        %v1081 = vadd.s32 %v1061, 160
        %v1082 = vadd.s32 %v1061, 168
        %v1083 = vadd.s32 %v1061, 176
        %v1084 = vadd.s32 %v1061, 184
        %v1085 = vadd.s32 %v1061, 192
        %v1086 = vadd.s32 %v1061, 200
        %v1087 = vadd.s32 %v1061, 208
        %v1088 = vadd.s32 %v1061, 216
        %v1089 = vadd.s32 %v1061, 224
        %v1090 = vadd.s32 %v1061, 232
        %v1091 = vadd.s32 %v1061, 240
        %v1092 = vadd.s32 %v1061, 248
        %vm1093 = vcmp.eq.f32.partialorder %v922, %v1022
        %vm1094 = vcmp.eq.f32.partialorder %v923, %v1059
        %vm1095 = vcmp.eq.f32.partialorder %v924, %v1022
        %vm1096 = vcmp.eq.f32.partialorder %v925, %v1059
        %vm1097 = vcmp.eq.f32.partialorder %v926, %v1022
        %vm1098 = vcmp.eq.f32.partialorder %v927, %v1059
        %vm1099 = vcmp.eq.f32.partialorder %v928, %v1022
        %vm1100 = vcmp.eq.f32.partialorder %v929, %v1059
        %vm1101 = vcmp.eq.f32.partialorder %v930, %v1022
        %vm1102 = vcmp.eq.f32.partialorder %v931, %v1059
        %vm1103 = vcmp.eq.f32.partialorder %v932, %v1022
        %vm1104 = vcmp.eq.f32.partialorder %v933, %v1059
        %vm1105 = vcmp.eq.f32.partialorder %v934, %v1022
        %vm1106 = vcmp.eq.f32.partialorder %v935, %v1059
        %vm1107 = vcmp.eq.f32.partialorder %v936, %v1022
        %vm1108 = vcmp.eq.f32.partialorder %v937, %v1059
        %vm1109 = vcmp.eq.f32.partialorder %v938, %v1022
        %vm1110 = vcmp.eq.f32.partialorder %v939, %v1059
        %vm1111 = vcmp.eq.f32.partialorder %v940, %v1022
        %vm1112 = vcmp.eq.f32.partialorder %v941, %v1059
        %vm1113 = vcmp.eq.f32.partialorder %v942, %v1022
        %vm1114 = vcmp.eq.f32.partialorder %v943, %v1059
        %vm1115 = vcmp.eq.f32.partialorder %v944, %v1022
        %vm1116 = vcmp.eq.f32.partialorder %v945, %v1059
        %vm1117 = vcmp.eq.f32.partialorder %v946, %v1022
        %vm1118 = vcmp.eq.f32.partialorder %v947, %v1059
        %vm1119 = vcmp.eq.f32.partialorder %v948, %v1022
        %vm1120 = vcmp.eq.f32.partialorder %v949, %v1059
        %vm1121 = vcmp.eq.f32.partialorder %v950, %v1022
        %vm1122 = vcmp.eq.f32.partialorder %v951, %v1059
        %vm1123 = vcmp.eq.f32.partialorder %v952, %v1022
        %vm1124 = vcmp.eq.f32.partialorder %v953, %v1059
        %vm1125 = vcmp.eq.f32.partialorder %v954, %v1022
        %vm1126 = vcmp.eq.f32.partialorder %v955, %v1059
        %vm1127 = vcmp.eq.f32.partialorder %v956, %v1022
        %vm1128 = vcmp.eq.f32.partialorder %v957, %v1059
        %vm1129 = vcmp.eq.f32.partialorder %v958, %v1022
        %vm1130 = vcmp.eq.f32.partialorder %v959, %v1059
        %vm1131 = vcmp.eq.f32.partialorder %v960, %v1022
        %vm1132 = vcmp.eq.f32.partialorder %v961, %v1059
        %vm1133 = vcmp.eq.f32.partialorder %v962, %v1022
        %vm1134 = vcmp.eq.f32.partialorder %v963, %v1059
        %vm1135 = vcmp.eq.f32.partialorder %v964, %v1022
        %vm1136 = vcmp.eq.f32.partialorder %v965, %v1059
        %vm1137 = vcmp.eq.f32.partialorder %v966, %v1022
        %vm1138 = vcmp.eq.f32.partialorder %v967, %v1059
        %vm1139 = vcmp.eq.f32.partialorder %v968, %v1022
        %vm1140 = vcmp.eq.f32.partialorder %v969, %v1059
        %vm1141 = vcmp.eq.f32.partialorder %v970, %v1022
        %vm1142 = vcmp.eq.f32.partialorder %v971, %v1059
        %vm1143 = vcmp.eq.f32.partialorder %v972, %v1022
        %vm1144 = vcmp.eq.f32.partialorder %v973, %v1059
        %vm1145 = vcmp.eq.f32.partialorder %v974, %v1022
        %vm1146 = vcmp.eq.f32.partialorder %v975, %v1059
        %vm1147 = vcmp.eq.f32.partialorder %v976, %v1022
        %vm1148 = vcmp.eq.f32.partialorder %v977, %v1059
        %vm1149 = vcmp.eq.f32.partialorder %v978, %v1022
        %vm1150 = vcmp.eq.f32.partialorder %v979, %v1059
        %vm1151 = vcmp.eq.f32.partialorder %v980, %v1022
        %vm1152 = vcmp.eq.f32.partialorder %v981, %v1059
        %vm1153 = vcmp.eq.f32.partialorder %v982, %v1022
        %vm1154 = vcmp.eq.f32.partialorder %v983, %v1059
        %vm1155 = vcmp.eq.f32.partialorder %v984, %v1022
        %vm1156 = vcmp.eq.f32.partialorder %v985, %v1059
        %v1157 = vsel %vm1093, %v1061, 256
        %v1158 = vsel %vm1094, %v1061, 256
        %v1159 = vsel %vm1095, %v1062, 256
        %v1160 = vsel %vm1096, %v1062, 256
        %v1161 = vsel %vm1097, %v1063, 256
        %v1162 = vsel %vm1098, %v1063, 256
        %v1163 = vsel %vm1099, %v1064, 256
        %v1164 = vsel %vm1100, %v1064, 256
        %v1165 = vsel %vm1101, %v1065, 256
        %v1166 = vsel %vm1102, %v1065, 256
        %v1167 = vsel %vm1103, %v1066, 256
        %v1168 = vsel %vm1104, %v1066, 256
        %v1169 = vsel %vm1105, %v1067, 256
        %v1170 = vsel %vm1106, %v1067, 256
        %v1171 = vsel %vm1107, %v1068, 256
        %v1172 = vsel %vm1108, %v1068, 256
        %v1173 = vsel %vm1109, %v1069, 256
        %v1174 = vsel %vm1110, %v1069, 256
        %v1175 = vsel %vm1111, %v1070, 256
        %v1176 = vsel %vm1112, %v1070, 256
        %v1177 = vsel %vm1113, %v1071, 256
        %v1178 = vsel %vm1114, %v1071, 256
        %v1179 = vsel %vm1115, %v1072, 256
        %v1180 = vsel %vm1116, %v1072, 256
        %v1181 = vsel %vm1117, %v1073, 256
        %v1182 = vsel %vm1118, %v1073, 256
        %v1183 = vsel %vm1119, %v1074, 256
        %v1184 = vsel %vm1120, %v1074, 256
        %v1185 = vsel %vm1121, %v1075, 256
        %v1186 = vsel %vm1122, %v1075, 256
        %v1187 = vsel %vm1123, %v1076, 256
        %v1188 = vsel %vm1124, %v1076, 256
        %v1189 = vsel %vm1125, %v1077, 256
        %v1190 = vsel %vm1126, %v1077, 256
        %v1191 = vsel %vm1127, %v1078, 256
        %v1192 = vsel %vm1128, %v1078, 256
        %v1193 = vsel %vm1129, %v1079, 256
        %v1194 = vsel %vm1130, %v1079, 256
        %v1195 = vsel %vm1131, %v1080, 256
        %v1196 = vsel %vm1132, %v1080, 256
        %v1197 = vsel %vm1133, %v1081, 256
        %v1198 = vsel %vm1134, %v1081, 256
        %v1199 = vsel %vm1135, %v1082, 256
        %v1200 = vsel %vm1136, %v1082, 256
        %v1201 = vsel %vm1137, %v1083, 256
        %v1202 = vsel %vm1138, %v1083, 256
        %v1203 = vsel %vm1139, %v1084, 256
        %v1204 = vsel %vm1140, %v1084, 256
        %v1205 = vsel %vm1141, %v1085, 256
        %v1206 = vsel %vm1142, %v1085, 256
        %v1207 = vsel %vm1143, %v1086, 256
        %v1208 = vsel %vm1144, %v1086, 256
        %v1209 = vsel %vm1145, %v1087, 256
        %v1210 = vsel %vm1146, %v1087, 256
        %v1211 = vsel %vm1147, %v1088, 256
        %v1212 = vsel %vm1148, %v1088, 256
        %v1213 = vsel %vm1149, %v1089, 256
        %v1214 = vsel %vm1150, %v1089, 256
        %v1215 = vsel %vm1151, %v1090, 256
        %v1216 = vsel %vm1152, %v1090, 256
        %v1217 = vsel %vm1153, %v1091, 256
        %v1218 = vsel %vm1154, %v1091, 256
        %v1219 = vsel %vm1155, %v1092, 256
        %v1220 = vsel %vm1156, %v1092, 256
        %vm1221 = vcmp.lt.s32.totalorder %v1157, %v1161
        %v1222 = vsel %vm1221, %v1157, %v1161
        %vm1223 = vcmp.lt.s32.totalorder %v1159, %v1163
        %v1224 = vsel %vm1223, %v1159, %v1163
        %vm1225 = vcmp.lt.s32.totalorder %v1222, %v1165
        %v1226 = vsel %vm1225, %v1222, %v1165
        %vm1227 = vcmp.lt.s32.totalorder %v1224, %v1167
        %v1228 = vsel %vm1227, %v1224, %v1167
        %vm1229 = vcmp.lt.s32.totalorder %v1226, %v1169
        %v1230 = vsel %vm1229, %v1226, %v1169
        %vm1231 = vcmp.lt.s32.totalorder %v1228, %v1171
        %v1232 = vsel %vm1231, %v1228, %v1171
        %vm1233 = vcmp.lt.s32.totalorder %v1230, %v1173
        %v1234 = vsel %vm1233, %v1230, %v1173
        %vm1235 = vcmp.lt.s32.totalorder %v1232, %v1175
        %v1236 = vsel %vm1235, %v1232, %v1175
        %vm1237 = vcmp.lt.s32.totalorder %v1234, %v1177
        %v1238 = vsel %vm1237, %v1234, %v1177
        %vm1239 = vcmp.lt.s32.totalorder %v1236, %v1179
        %v1240 = vsel %vm1239, %v1236, %v1179
        %vm1241 = vcmp.lt.s32.totalorder %v1238, %v1181
        %v1242 = vsel %vm1241, %v1238, %v1181
        %vm1243 = vcmp.lt.s32.totalorder %v1240, %v1183
        %v1244 = vsel %vm1243, %v1240, %v1183
        %vm1245 = vcmp.lt.s32.totalorder %v1242, %v1185
        %v1246 = vsel %vm1245, %v1242, %v1185
        %vm1247 = vcmp.lt.s32.totalorder %v1244, %v1187
        %v1248 = vsel %vm1247, %v1244, %v1187
        %vm1249 = vcmp.lt.s32.totalorder %v1246, %v1189
        %v1250 = vsel %vm1249, %v1246, %v1189
        %vm1251 = vcmp.lt.s32.totalorder %v1248, %v1191
        %v1252 = vsel %vm1251, %v1248, %v1191
        %vm1253 = vcmp.lt.s32.totalorder %v1250, %v1193
        %v1254 = vsel %vm1253, %v1250, %v1193
        %vm1255 = vcmp.lt.s32.totalorder %v1252, %v1195
        %v1256 = vsel %vm1255, %v1252, %v1195
        %vm1257 = vcmp.lt.s32.totalorder %v1254, %v1197
        %v1258 = vsel %vm1257, %v1254, %v1197
        %vm1259 = vcmp.lt.s32.totalorder %v1256, %v1199
        %v1260 = vsel %vm1259, %v1256, %v1199
        %vm1261 = vcmp.lt.s32.totalorder %v1258, %v1201
        %v1262 = vsel %vm1261, %v1258, %v1201
        %vm1263 = vcmp.lt.s32.totalorder %v1260, %v1203
        %v1264 = vsel %vm1263, %v1260, %v1203
        %vm1265 = vcmp.lt.s32.totalorder %v1262, %v1205
        %v1266 = vsel %vm1265, %v1262, %v1205
        %vm1267 = vcmp.lt.s32.totalorder %v1264, %v1207
        %v1268 = vsel %vm1267, %v1264, %v1207
        %vm1269 = vcmp.lt.s32.totalorder %v1266, %v1209
        %v1270 = vsel %vm1269, %v1266, %v1209
        %vm1271 = vcmp.lt.s32.totalorder %v1268, %v1211
        %v1272 = vsel %vm1271, %v1268, %v1211
        %vm1273 = vcmp.lt.s32.totalorder %v1270, %v1213
        %v1274 = vsel %vm1273, %v1270, %v1213
        %vm1275 = vcmp.lt.s32.totalorder %v1272, %v1215
        %v1276 = vsel %vm1275, %v1272, %v1215
        %vm1277 = vcmp.lt.s32.totalorder %v1274, %v1217
        %v1278 = vsel %vm1277, %v1274, %v1217
        %vm1279 = vcmp.lt.s32.totalorder %v1276, %v1219
        %v1280 = vsel %vm1279, %v1276, %v1219
        %vm1281 = vcmp.lt.s32.totalorder %v1278, %v1280
        %v1282 = vsel %vm1281, %v1278, %v1280
        %v1283 = vrot.slane %v1282, 4
        %vm1284 = vcmp.lt.s32.totalorder %v1282, %v1283
        %v1285 = vsel %vm1284, %v1282, %v1283
        %v1286 = vrot.slane %v1285, 2
        %vm1287 = vcmp.lt.s32.totalorder %v1285, %v1286
        %v1288 = vsel %vm1287, %v1285, %v1286
        %v1289 = vrot.slane %v1288, 1
        %vm1290 = vcmp.lt.s32.totalorder %v1288, %v1289
        %v1291 = vsel %vm1290, %v1288, %v1289
        %vm1292 = vcmp.lt.s32.totalorder %v1158, %v1162
        %v1293 = vsel %vm1292, %v1158, %v1162
        %vm1294 = vcmp.lt.s32.totalorder %v1160, %v1164
        %v1295 = vsel %vm1294, %v1160, %v1164
        %vm1296 = vcmp.lt.s32.totalorder %v1293, %v1166
        %v1297 = vsel %vm1296, %v1293, %v1166
        %vm1298 = vcmp.lt.s32.totalorder %v1295, %v1168
        %v1299 = vsel %vm1298, %v1295, %v1168
        %vm1300 = vcmp.lt.s32.totalorder %v1297, %v1170
        %v1301 = vsel %vm1300, %v1297, %v1170
        %vm1302 = vcmp.lt.s32.totalorder %v1299, %v1172
        %v1303 = vsel %vm1302, %v1299, %v1172
        %vm1304 = vcmp.lt.s32.totalorder %v1301, %v1174
        %v1305 = vsel %vm1304, %v1301, %v1174
        %vm1306 = vcmp.lt.s32.totalorder %v1303, %v1176
        %v1307 = vsel %vm1306, %v1303, %v1176
        %vm1308 = vcmp.lt.s32.totalorder %v1305, %v1178
        %v1309 = vsel %vm1308, %v1305, %v1178
        %vm1310 = vcmp.lt.s32.totalorder %v1307, %v1180
        %v1311 = vsel %vm1310, %v1307, %v1180
        %vm1312 = vcmp.lt.s32.totalorder %v1309, %v1182
        %v1313 = vsel %vm1312, %v1309, %v1182
        %vm1314 = vcmp.lt.s32.totalorder %v1311, %v1184
        %v1315 = vsel %vm1314, %v1311, %v1184
        %vm1316 = vcmp.lt.s32.totalorder %v1313, %v1186
        %v1317 = vsel %vm1316, %v1313, %v1186
        %vm1318 = vcmp.lt.s32.totalorder %v1315, %v1188
        %v1319 = vsel %vm1318, %v1315, %v1188
        %vm1320 = vcmp.lt.s32.totalorder %v1317, %v1190
        %v1321 = vsel %vm1320, %v1317, %v1190
        %vm1322 = vcmp.lt.s32.totalorder %v1319, %v1192
        %v1323 = vsel %vm1322, %v1319, %v1192
        %vm1324 = vcmp.lt.s32.totalorder %v1321, %v1194
        %v1325 = vsel %vm1324, %v1321, %v1194
        %vm1326 = vcmp.lt.s32.totalorder %v1323, %v1196
        %v1327 = vsel %vm1326, %v1323, %v1196
        %vm1328 = vcmp.lt.s32.totalorder %v1325, %v1198
        %v1329 = vsel %vm1328, %v1325, %v1198
        %vm1330 = vcmp.lt.s32.totalorder %v1327, %v1200
        %v1331 = vsel %vm1330, %v1327, %v1200
        %vm1332 = vcmp.lt.s32.totalorder %v1329, %v1202
        %v1333 = vsel %vm1332, %v1329, %v1202
        %vm1334 = vcmp.lt.s32.totalorder %v1331, %v1204
        %v1335 = vsel %vm1334, %v1331, %v1204
        %vm1336 = vcmp.lt.s32.totalorder %v1333, %v1206
        %v1337 = vsel %vm1336, %v1333, %v1206
        %vm1338 = vcmp.lt.s32.totalorder %v1335, %v1208
        %v1339 = vsel %vm1338, %v1335, %v1208
        %vm1340 = vcmp.lt.s32.totalorder %v1337, %v1210
        %v1341 = vsel %vm1340, %v1337, %v1210
        %vm1342 = vcmp.lt.s32.totalorder %v1339, %v1212
        %v1343 = vsel %vm1342, %v1339, %v1212
        %vm1344 = vcmp.lt.s32.totalorder %v1341, %v1214
        %v1345 = vsel %vm1344, %v1341, %v1214
        %vm1346 = vcmp.lt.s32.totalorder %v1343, %v1216
        %v1347 = vsel %vm1346, %v1343, %v1216
        %vm1348 = vcmp.lt.s32.totalorder %v1345, %v1218
        %v1349 = vsel %vm1348, %v1345, %v1218
        %vm1350 = vcmp.lt.s32.totalorder %v1347, %v1220
        %v1351 = vsel %vm1350, %v1347, %v1220
        %vm1352 = vcmp.lt.s32.totalorder %v1349, %v1351
        %v1353 = vsel %vm1352, %v1349, %v1351
        %v1354 = vrot.slane %v1353, 4
        %vm1355 = vcmp.lt.s32.totalorder %v1353, %v1354
        %v1356 = vsel %vm1355, %v1353, %v1354
        %v1357 = vrot.slane %v1356, 2
        %vm1358 = vcmp.lt.s32.totalorder %v1356, %v1357
        %v1359 = vsel %vm1358, %v1356, %v1357
        %v1360 = vrot.slane %v1359, 1
        %vm1361 = vcmp.lt.s32.totalorder %v1359, %v1360
        %v1362 = vsel %vm1361, %v1359, %v1360
        %vm1363 = vcmp.eq.s32.totalorder %v1061, %v1291
        %vm1364 = vcmp.eq.s32.totalorder %v1061, %v1362
        %vm1365 = vcmp.eq.s32.totalorder %v1062, %v1291
        %vm1366 = vcmp.eq.s32.totalorder %v1062, %v1362
        %vm1367 = vcmp.eq.s32.totalorder %v1063, %v1291
        %vm1368 = vcmp.eq.s32.totalorder %v1063, %v1362
        %vm1369 = vcmp.eq.s32.totalorder %v1064, %v1291
        %vm1370 = vcmp.eq.s32.totalorder %v1064, %v1362
        %vm1371 = vcmp.eq.s32.totalorder %v1065, %v1291
        %vm1372 = vcmp.eq.s32.totalorder %v1065, %v1362
        %vm1373 = vcmp.eq.s32.totalorder %v1066, %v1291
        %vm1374 = vcmp.eq.s32.totalorder %v1066, %v1362
        %vm1375 = vcmp.eq.s32.totalorder %v1067, %v1291
        %vm1376 = vcmp.eq.s32.totalorder %v1067, %v1362
        %vm1377 = vcmp.eq.s32.totalorder %v1068, %v1291
        %vm1378 = vcmp.eq.s32.totalorder %v1068, %v1362
        %vm1379 = vcmp.eq.s32.totalorder %v1069, %v1291
        %vm1380 = vcmp.eq.s32.totalorder %v1069, %v1362
        %vm1381 = vcmp.eq.s32.totalorder %v1070, %v1291
        %vm1382 = vcmp.eq.s32.totalorder %v1070, %v1362
        %vm1383 = vcmp.eq.s32.totalorder %v1071, %v1291
        %vm1384 = vcmp.eq.s32.totalorder %v1071, %v1362
        %vm1385 = vcmp.eq.s32.totalorder %v1072, %v1291
        %vm1386 = vcmp.eq.s32.totalorder %v1072, %v1362
        %vm1387 = vcmp.eq.s32.totalorder %v1073, %v1291
        %vm1388 = vcmp.eq.s32.totalorder %v1073, %v1362
        %vm1389 = vcmp.eq.s32.totalorder %v1074, %v1291
        %vm1390 = vcmp.eq.s32.totalorder %v1074, %v1362
        %vm1391 = vcmp.eq.s32.totalorder %v1075, %v1291
        %vm1392 = vcmp.eq.s32.totalorder %v1075, %v1362
        %vm1393 = vcmp.eq.s32.totalorder %v1076, %v1291
        %vm1394 = vcmp.eq.s32.totalorder %v1076, %v1362
        %vm1395 = vcmp.eq.s32.totalorder %v1077, %v1291
        %vm1396 = vcmp.eq.s32.totalorder %v1077, %v1362
        %vm1397 = vcmp.eq.s32.totalorder %v1078, %v1291
        %vm1398 = vcmp.eq.s32.totalorder %v1078, %v1362
        %vm1399 = vcmp.eq.s32.totalorder %v1079, %v1291
        %vm1400 = vcmp.eq.s32.totalorder %v1079, %v1362
        %vm1401 = vcmp.eq.s32.totalorder %v1080, %v1291
        %vm1402 = vcmp.eq.s32.totalorder %v1080, %v1362
        %vm1403 = vcmp.eq.s32.totalorder %v1081, %v1291
        %vm1404 = vcmp.eq.s32.totalorder %v1081, %v1362
        %vm1405 = vcmp.eq.s32.totalorder %v1082, %v1291
        %vm1406 = vcmp.eq.s32.totalorder %v1082, %v1362
        %vm1407 = vcmp.eq.s32.totalorder %v1083, %v1291
        %vm1408 = vcmp.eq.s32.totalorder %v1083, %v1362
        %vm1409 = vcmp.eq.s32.totalorder %v1084, %v1291
        %vm1410 = vcmp.eq.s32.totalorder %v1084, %v1362
        %vm1411 = vcmp.eq.s32.totalorder %v1085, %v1291
        %vm1412 = vcmp.eq.s32.totalorder %v1085, %v1362
        %vm1413 = vcmp.eq.s32.totalorder %v1086, %v1291
        %vm1414 = vcmp.eq.s32.totalorder %v1086, %v1362
        %vm1415 = vcmp.eq.s32.totalorder %v1087, %v1291
        %vm1416 = vcmp.eq.s32.totalorder %v1087, %v1362
        %vm1417 = vcmp.eq.s32.totalorder %v1088, %v1291
        %vm1418 = vcmp.eq.s32.totalorder %v1088, %v1362
        %vm1419 = vcmp.eq.s32.totalorder %v1089, %v1291
        %vm1420 = vcmp.eq.s32.totalorder %v1089, %v1362
        %vm1421 = vcmp.eq.s32.totalorder %v1090, %v1291
        %vm1422 = vcmp.eq.s32.totalorder %v1090, %v1362
        %vm1423 = vcmp.eq.s32.totalorder %v1091, %v1291
        %vm1424 = vcmp.eq.s32.totalorder %v1091, %v1362
        %vm1425 = vcmp.eq.s32.totalorder %v1092, %v1291
        %vm1426 = vcmp.eq.s32.totalorder %v1092, %v1362
        %v1427 = vsel %vm1363, 1, 0
        %v1428 = vsel %vm1364, 1, 0
        %v1429 = vsel %vm1365, 1, 0
        %v1430 = vsel %vm1366, 1, 0
        %v1431 = vsel %vm1367, 1, 0
        %v1432 = vsel %vm1368, 1, 0
        %v1433 = vsel %vm1369, 1, 0
        %v1434 = vsel %vm1370, 1, 0
        %v1435 = vsel %vm1371, 1, 0
        %v1436 = vsel %vm1372, 1, 0
        %v1437 = vsel %vm1373, 1, 0
        %v1438 = vsel %vm1374, 1, 0
        %v1439 = vsel %vm1375, 1, 0
        %v1440 = vsel %vm1376, 1, 0
        %v1441 = vsel %vm1377, 1, 0
        %v1442 = vsel %vm1378, 1, 0
        %v1443 = vsel %vm1379, 1, 0
        %v1444 = vsel %vm1380, 1, 0
        %v1445 = vsel %vm1381, 1, 0
        %v1446 = vsel %vm1382, 1, 0
        %v1447 = vsel %vm1383, 1, 0
        %v1448 = vsel %vm1384, 1, 0
        %v1449 = vsel %vm1385, 1, 0
        %v1450 = vsel %vm1386, 1, 0
        %v1451 = vsel %vm1387, 1, 0
        %v1452 = vsel %vm1388, 1, 0
        %v1453 = vsel %vm1389, 1, 0
        %v1454 = vsel %vm1390, 1, 0
        %v1455 = vsel %vm1391, 1, 0
        %v1456 = vsel %vm1392, 1, 0
        %v1457 = vsel %vm1393, 1, 0
        %v1458 = vsel %vm1394, 1, 0
        %v1459 = vsel %vm1395, 1, 0
        %v1460 = vsel %vm1396, 1, 0
        %v1461 = vsel %vm1397, 1, 0
        %v1462 = vsel %vm1398, 1, 0
        %v1463 = vsel %vm1399, 1, 0
        %v1464 = vsel %vm1400, 1, 0
        %v1465 = vsel %vm1401, 1, 0
        %v1466 = vsel %vm1402, 1, 0
        %v1467 = vsel %vm1403, 1, 0
        %v1468 = vsel %vm1404, 1, 0
        %v1469 = vsel %vm1405, 1, 0
        %v1470 = vsel %vm1406, 1, 0
        %v1471 = vsel %vm1407, 1, 0
        %v1472 = vsel %vm1408, 1, 0
        %v1473 = vsel %vm1409, 1, 0
        %v1474 = vsel %vm1410, 1, 0
        %v1475 = vsel %vm1411, 1, 0
        %v1476 = vsel %vm1412, 1, 0
        %v1477 = vsel %vm1413, 1, 0
        %v1478 = vsel %vm1414, 1, 0
        %v1479 = vsel %vm1415, 1, 0
        %v1480 = vsel %vm1416, 1, 0
        %v1481 = vsel %vm1417, 1, 0
        %v1482 = vsel %vm1418, 1, 0
        %v1483 = vsel %vm1419, 1, 0
        %v1484 = vsel %vm1420, 1, 0
        %v1485 = vsel %vm1421, 1, 0
        %v1486 = vsel %vm1422, 1, 0
        %v1487 = vsel %vm1423, 1, 0
        %v1488 = vsel %vm1424, 1, 0
        %v1489 = vsel %vm1425, 1, 0
        %v1490 = vsel %vm1426, 1, 0
        %v1491 = vcvt.s32.f32 %v1427
        %v1492 = vcvt.s32.f32 %v1428
        %v1493 = vcvt.s32.f32 %v1429
        %v1494 = vcvt.s32.f32 %v1430
        %v1495 = vcvt.s32.f32 %v1431
        %v1496 = vcvt.s32.f32 %v1432
        %v1497 = vcvt.s32.f32 %v1433
        %v1498 = vcvt.s32.f32 %v1434
        %v1499 = vcvt.s32.f32 %v1435
        %v1500 = vcvt.s32.f32 %v1436
        %v1501 = vcvt.s32.f32 %v1437
        %v1502 = vcvt.s32.f32 %v1438
        %v1503 = vcvt.s32.f32 %v1439
        %v1504 = vcvt.s32.f32 %v1440
        %v1505 = vcvt.s32.f32 %v1441
        %v1506 = vcvt.s32.f32 %v1442
        %v1507 = vcvt.s32.f32 %v1443
        %v1508 = vcvt.s32.f32 %v1444
        %v1509 = vcvt.s32.f32 %v1445
        %v1510 = vcvt.s32.f32 %v1446
        %v1511 = vcvt.s32.f32 %v1447
        %v1512 = vcvt.s32.f32 %v1448
        %v1513 = vcvt.s32.f32 %v1449
        %v1514 = vcvt.s32.f32 %v1450
        %v1515 = vcvt.s32.f32 %v1451
        %v1516 = vcvt.s32.f32 %v1452
        %v1517 = vcvt.s32.f32 %v1453
        %v1518 = vcvt.s32.f32 %v1454
        %v1519 = vcvt.s32.f32 %v1455
        %v1520 = vcvt.s32.f32 %v1456
        %v1521 = vcvt.s32.f32 %v1457
        %v1522 = vcvt.s32.f32 %v1458
        %v1523 = vcvt.s32.f32 %v1459
        %v1524 = vcvt.s32.f32 %v1460
        %v1525 = vcvt.s32.f32 %v1461
        %v1526 = vcvt.s32.f32 %v1462
        %v1527 = vcvt.s32.f32 %v1463
        %v1528 = vcvt.s32.f32 %v1464
        %v1529 = vcvt.s32.f32 %v1465
        %v1530 = vcvt.s32.f32 %v1466
        %v1531 = vcvt.s32.f32 %v1467
        %v1532 = vcvt.s32.f32 %v1468
        %v1533 = vcvt.s32.f32 %v1469
        %v1534 = vcvt.s32.f32 %v1470
        %v1535 = vcvt.s32.f32 %v1471
        %v1536 = vcvt.s32.f32 %v1472
        %v1537 = vcvt.s32.f32 %v1473
        %v1538 = vcvt.s32.f32 %v1474
        %v1539 = vcvt.s32.f32 %v1475
        %v1540 = vcvt.s32.f32 %v1476
        %v1541 = vcvt.s32.f32 %v1477
        %v1542 = vcvt.s32.f32 %v1478
        %v1543 = vcvt.s32.f32 %v1479
        %v1544 = vcvt.s32.f32 %v1480
        %v1545 = vcvt.s32.f32 %v1481
        %v1546 = vcvt.s32.f32 %v1482
        %v1547 = vcvt.s32.f32 %v1483
        %v1548 = vcvt.s32.f32 %v1484
        %v1549 = vcvt.s32.f32 %v1485
        %v1550 = vcvt.s32.f32 %v1486
        %v1551 = vcvt.s32.f32 %v1487
        %v1552 = vcvt.s32.f32 %v1488
        %v1553 = vcvt.s32.f32 %v1489
        %v1554 = vcvt.s32.f32 %v1490
        %v1555 = vld [vmem:[%s2] sm:$0xff]
        %v1556 = vld [vmem:[%s2 + $0x8] sm:$0xff]
        %1557 = vmatprep.subr.mxu0 %v1522
        %1558 = vmatpush1.msra.mxu0 %v1521
        %1559 = vmatprep.subr.mxu0 %v1520
        %1560 = vmatpush1.msra.mxu0 %v1519
        %1561 = vmatprep.subr.mxu0 %v1518
        %1562 = vmatpush1.msra.mxu0 %v1517
        %1563 = vmatprep.subr.mxu0 %v1516
        %1564 = vmatpush1.msra.mxu0 %v1515
        %1565 = vmatprep.subr.mxu0 %v1514
        %1566 = vmatpush1.msra.mxu0 %v1513
        %1567 = vmatprep.subr.mxu0 %v1512
        %1568 = vmatpush1.msra.mxu0 %v1511
        %1569 = vmatprep.subr.mxu0 %v1510
        %1570 = vmatpush1.msra.mxu0 %v1509
        %1571 = vmatprep.subr.mxu0 %v1508
        %1572 = vmatpush1.msra.mxu0 %v1507
        %1573 = vmatprep.subr.mxu0 %v1506
        %1574 = vmatpush1.msra.mxu0 %v1505
        %1575 = vmatprep.subr.mxu0 %v1504
        %1576 = vmatpush1.msra.mxu0 %v1503
        %1577 = vmatprep.subr.mxu0 %v1502
        %1578 = vmatpush1.msra.mxu0 %v1501
        %1579 = vmatprep.subr.mxu0 %v1500
        %1580 = vmatpush1.msra.mxu0 %v1499
        %1581 = vmatprep.subr.mxu0 %v1498
        %1582 = vmatpush1.msra.mxu0 %v1497
        %1583 = vmatprep.subr.mxu0 %v1496
        %1584 = vmatpush1.msra.mxu0 %v1495
        %1585 = vmatprep.subr.mxu0 %v1494
        %1586 = vmatpush1.msra.mxu0 %v1493
        %1587 = vmatprep.subr.mxu0 %v1492
        %1588 = vmatpush1.msra.mxu0 %v1491
        %1589 = vmatprep.subr.mxu0 %v1554
        %1590 = vmatpush2.msra.mxu0 %v1553
        %1591 = vmatprep.subr.mxu0 %v1552
        %1592 = vmatpush2.msra.mxu0 %v1551
        %1593 = vmatprep.subr.mxu0 %v1550
        %1594 = vmatpush2.msra.mxu0 %v1549
        %1595 = vmatprep.subr.mxu0 %v1548
        %1596 = vmatpush2.msra.mxu0 %v1547
        %1597 = vmatprep.subr.mxu0 %v1546
        %1598 = vmatpush2.msra.mxu0 %v1545
        %1599 = vmatprep.subr.mxu0 %v1544
        %1600 = vmatpush2.msra.mxu0 %v1543
        %1601 = vmatprep.subr.mxu0 %v1542
        %1602 = vmatpush2.msra.mxu0 %v1541
        %1603 = vmatprep.subr.mxu0 %v1540
        %1604 = vmatpush2.msra.mxu0 %v1539
        %1605 = vmatprep.subr.mxu0 %v1538
        %1606 = vmatpush2.msra.mxu0 %v1537
        %1607 = vmatprep.subr.mxu0 %v1536
        %1608 = vmatpush2.msra.mxu0 %v1535
        %1609 = vmatprep.subr.mxu0 %v1534
        %1610 = vmatpush2.msra.mxu0 %v1533
        %1611 = vmatprep.subr.mxu0 %v1532
        %1612 = vmatpush2.msra.mxu0 %v1531
        %1613 = vmatprep.subr.mxu0 %v1530
        %1614 = vmatpush2.msra.mxu0 %v1529
        %1615 = vmatprep.subr.mxu0 %v1528
        %1616 = vmatpush2.msra.mxu0 %v1527
        %1617 = vmatprep.subr.mxu0 %v1526
        %1618 = vmatpush2.msra.mxu0 %v1525
        %1619 = vmatprep.subr.mxu0 %v1524
        %1620 = vmatpush2.msra.mxu0 %v1523
        %1621 = vmatprep.mubr.f32.mxu0 %v1556
        %1622 = vmatmul.mubr.f32.gmra.mxu0 %v1555
        %v1623 = vpop.f32.mrf.mxu0
        %v1624 = vadd.f32 0.0, %v1623
        %v1625 = vpop.f32.mrf.mxu0
        %v1626 = vadd.f32 0.0, %v1625
        %1627 = vdwg.mxu0
        %1628 = vst [vmem:[%s270] sm:$0xff] %v1624
        %1629 = vst [vmem:[%s270 + $0x8] sm:$0xff] %v1626
        %v1630 = vcombine.low %v1291, %v1362
        %v1632 = vunpack.c.l.s4 1966171168
        %v1633 = vunpack.c.0.s8 %v1632
        %v1634 = vlaneseq
        %v1635 = vshrl.u32 %v1634, 7
        %v1636 = vsub.s32 %v1633, %v1635
        %v1637 = vrot.slane %v1630, %v1636
        %v1639 = vunpack.c.l.s4 1966171168
        %v1640 = vunpack.c.0.s8 %v1639
        %v1641 = vlaneseq
        %v1642 = vshrl.u32 %v1641, 7
        %v1643 = vsub.s32 %v1640, %v1642
        %v1644 = vrot.slane %v1637, %v1643
        %v1645 = vlaneseq
        %vm1646 = vcmp.ge.s32.totalorder %v1645, 0
        %vm1647 = vcmp.lt.s32.totalorder %v1645, 256
        %vm1648 = vmand %vm1646, %vm1647
        %1649 = vst.msk [vmem:[%s253] sm:$0x3] %vm1648, %v1644
        %v1650 = vsub.f32 %v1624, %v278
        %v1651 = vsub.f32 %v1626, %v279
        %v1652 = vmul.f32 %v1650, %v1650
        %v1653 = vmul.f32 %v1651, %v1651
        %v1654 = vrot.slane %v1652, 4
        %v1655 = vadd.f32 %v1652, %v1654
        %v1656 = vrot.slane %v1655, 2
        %v1657 = vadd.f32 %v1655, %v1656
        %v1658 = vrot.slane %v1657, 1
        %v1659 = vadd.f32 %v1657, %v1658
        %v1660 = vrot.slane %v1653, 4
        %v1661 = vadd.f32 %v1653, %v1660
        %v1662 = vrot.slane %v1661, 2
        %v1663 = vadd.f32 %v1661, %v1662
        %v1664 = vrot.slane %v1663, 1
        %v1665 = vadd.f32 %v1663, %v1664
        %v1668 = vcombine.low %v1659, %v1665
        %v1670 = vunpack.c.l.s4 1966171168
        %v1671 = vunpack.c.0.s8 %v1670
        %v1672 = vlaneseq
        %v1673 = vshrl.u32 %v1672, 7
        %v1674 = vsub.s32 %v1671, %v1673
        %v1675 = vrot.slane %v1668, %v1674
        %v1677 = vunpack.c.l.s4 1966171168
        %v1678 = vunpack.c.0.s8 %v1677
        %v1679 = vlaneseq
        %v1680 = vshrl.u32 %v1679, 7
        %v1681 = vsub.s32 %v1678, %v1680
        %v1682 = vrot.slane %v1675, %v1681
        %1684 = vst.msk [vmem:[%s276] sm:$0x3] %vm1648, %v1682
        %s1685 = smul.u32 2, %s21
        %p1686 = scmp.lt.s32.totalorder %s1685, 3
        %s1687 = scalar_select %p1686, %s1685, 3
        %s1688 = smul.addr %s1687, 8
        %s1689 = scalar_lea.vmem %s4, %s1688
        %s1690 = sand.u32 %s144, 1
        %s1691 = scalar_lea.sflag [#allocation3], %s1690
        %s1692 = sand.u32 %s144, 1
        %s1693 = smul.addr %s1692, 2
        %s1694 = scalar_lea.vmem [#allocation2], %s1693
        %s1695 = smul.u32 2, %s21
        %p1696 = scmp.lt.s32.totalorder %s1695, 3
        %s1697 = scalar_select %p1696, %s1695, 3
        %s1698 = scalar_lea.vmem %s6, %s1697
        // Predicated region
        $region37: #{vector_quantizer_forward.1} parent=35 // pred_check
          %p1699 = pneg %p128
        $region38: #{vector_quantizer_forward.1} parent=35 // pred_check_branch
          %1701 = sbr.rel (%p1699) target = $region40
        $region39: #{vector_quantizer_forward.1} parent=35 // pred_region
          %s1702 = smul.u32 2, %s21
        $region40: #{vector_quantizer_forward.1} parent=35 // pred_fallthru
          _
        // Predicated region
        $region41: #{vector_quantizer_forward.1} parent=35 // pred_check
          %p1703 = pneg %p154
        $region42: #{vector_quantizer_forward.1} parent=35 // pred_check_branch
          %1705 = sbr.rel (%p1703) target = $region44
        $region43: #{vector_quantizer_forward.1} parent=35 // pred_region
          %s1706 = smul.u32 2, %s21
          %s1708 = ssub.s32 32, 32
          %1709 = vsyncadd %s1691, %s1708
          %s1710 = smul.addr %s1706, 16
          %s1711 = scalar_lea.hbm %s5, %s1710
          %s1713 = sshll.u32 %s1694, 4
          %s1714 = int_to_ptr.vmem [resolvable:$true] %s1713
          %1716 = dma.vmem_to_hbm [thread:$0]  %s1714, 32, %s1711, %s1691
        $region44: #{vector_quantizer_forward.1} parent=35 // pred_fallthru
          _
        // Predicated region
        $region45: #{vector_quantizer_forward.1} parent=35 // pred_check
          %p1717 = pneg %p180
        $region46: #{vector_quantizer_forward.1} parent=35 // pred_check_branch
          %1719 = sbr.rel (%p1717) target = $region48
        $region47: #{vector_quantizer_forward.1} parent=35 // pred_region
          %s1720 = smul.u32 2, %s21
        $region48: #{vector_quantizer_forward.1} parent=35 // pred_fallthru
          _
      $region36: #{vector_quantizer_forward.1} parent=5 // pred_fallthru
        _
      %p1721 = scmp.le.s32.totalorder 2, %s16
      // Predicated region
      $region49: #{vector_quantizer_forward.1} parent=5 // pred_check
        %p1722 = pneg %p1721
      $region50: #{vector_quantizer_forward.1} parent=5 // pred_check_branch
        %1724 = sbr.rel (%p1722) target = $region52
      $region51: #{vector_quantizer_forward.1} parent=5 // pred_region
        %s1725 = ssub.s32 %s16, 2
        // Predicated region
        $region53: #{vector_quantizer_forward.1} parent=51 // pred_check
          %p1726 = pneg %p134
        $region54: #{vector_quantizer_forward.1} parent=51 // pred_check_branch
          %1728 = sbr.rel (%p1726) target = $region56
        $region55: #{vector_quantizer_forward.1} parent=51 // pred_region
          %s1729 = smul.u32 2, %s22
          %p1730 = scmp.lt.s32.totalorder %s1729, 3
          %s1731 = scalar_select %p1730, %s1729, 3
          %s1732 = smul.addr %s1731, 8
          %s1733 = scalar_lea.vmem %s4, %s1732
        $region56: #{vector_quantizer_forward.1} parent=51 // pred_fallthru
          _
        // Predicated region
        $region57: #{vector_quantizer_forward.1} parent=51 // pred_check
          %p1734 = pneg %p160
        $region58: #{vector_quantizer_forward.1} parent=51 // pred_check_branch
          %1736 = sbr.rel (%p1734) target = $region60
        $region59: #{vector_quantizer_forward.1} parent=51 // pred_region
          %s1737 = sand.u32 %s145, 1
          %s1738 = scalar_lea.sflag [#allocation3], %s1737
          %s1739 = sand.u32 %s145, 1
          %s1740 = smul.addr %s1739, 2
          %s1741 = scalar_lea.vmem [#allocation2], %s1740
          %1742 = dma.done %s1738, 32
        $region60: #{vector_quantizer_forward.1} parent=51 // pred_fallthru
          _
        // Predicated region
        $region61: #{vector_quantizer_forward.1} parent=51 // pred_check
          %p1743 = pneg %p186
        $region62: #{vector_quantizer_forward.1} parent=51 // pred_check_branch
          %1745 = sbr.rel (%p1743) target = $region64
        $region63: #{vector_quantizer_forward.1} parent=51 // pred_region
          %s1746 = smul.u32 2, %s22
          %p1747 = scmp.lt.s32.totalorder %s1746, 3
          %s1748 = scalar_select %p1747, %s1746, 3
          %s1749 = scalar_lea.vmem %s6, %s1748
        $region64: #{vector_quantizer_forward.1} parent=51 // pred_fallthru
          _
      $region52: #{vector_quantizer_forward.1} parent=5 // pred_fallthru
        _
    $region6: #{vector_quantizer_forward.1} parent=1 // loop_footer
      %s20 = sadd.s32 1, %s16
    $region7: #{vector_quantizer_forward.1} parent=1 // loop_footer_branch
      %15 = sbr.rel target = $region3
    $region8: #{vector_quantizer_forward.1} parent=1 // loop_exit
      _
    %1750 = vsyncpa [#allocation3], 1
    %s1751 = scalar_lea.sflag [#allocation3], 1
    %1752 = vsyncpa %s1751, 1

</llo_original>
